<compile_context>
chip_gen: v7x
topology: tpu7x:2x2x1
jax: 0.10.0
libtpu: 0.0.40
codegen_flags: <defaults>
</compile_context>

<pallas_src>
import math
import functools

import jax
import jax.numpy as jnp
from jax.experimental import pallas as pl
from jax.experimental.pallas import tpu as pltpu


def _round_up(x, m):
    return ((x + m - 1) // m) * m


def _cdiv(a, b):
    return (a + b - 1) // b


# ----------------------------------------------------------------------------
# Fused Pallas kernel: the whole LorentzianKAN forward for one batch tile.
# Refs: x, (ln_w, ln_b, base_b, packed_w) per layer, out, feat scratch.
# ----------------------------------------------------------------------------
def _fused_kan_kernel(x_ref, *refs, layer_cfgs):
    o_ref, feat_ref = refs[-2], refs[-1]
    p_refs = refs[:-2]

    x = x_ref[...].astype(jnp.float32)                       # (TB, D0)

    for li, cfg in enumerate(layer_cfgs):
        ln_w, ln_b, base_b, packed_w = p_refs[4 * li: 4 * li + 4]
        d_in = cfg["d_in"]
        k_l = cfg["k"]                                       # (1+G)*d_in

        # ---- base-branch features: SiLU(x) -> scratch columns [0, d_in)
        silu = x * jax.nn.sigmoid(x)
        feat_ref[:, 0:d_in] = silu.astype(jnp.bfloat16)

        # ---- LayerNorm (eps=1e-5, affine) in f32
        mean = jnp.mean(x, axis=-1, keepdims=True)
        var = jnp.mean((x - mean) ** 2, axis=-1, keepdims=True)
        xn = (x - mean) * jax.lax.rsqrt(var + 1e-5)
        xn = xn * ln_w[...] + ln_b[...]                      # (TB, d_in)

        # ---- Lorentzian basis, gamma hoisted: basis = 1/((xn-g)^2/g^2 + 1)
        xs = xn * cfg["inv_gamma"]                           # f32
        for g, gv in enumerate(cfg["grid_scaled"]):          # baked constants
            d = xs - gv
            basis = pl.reciprocal(d * d + 1.0, approx=True)  # EUP slot
            lo = d_in * (1 + g)
            feat_ref[:, lo:lo + d_in] = basis.astype(jnp.bfloat16)

        # ---- single fused MXU contraction: [silu | basis_0..G-1] @ packed_w
        acc = jnp.dot(feat_ref[:, 0:k_l], packed_w[...],
                      preferred_element_type=jnp.float32)
        x = acc + base_b[...]                                # (TB, d_out[_pad])

    o_ref[...] = x.astype(o_ref.dtype)


# ----------------------------------------------------------------------------
# Wrapper: one pallas_call for the whole network, batch-tiled & parallel.
# ----------------------------------------------------------------------------
def lorentzian_kan_forward(x, all_params):
    B, d_in0 = x.shape
    d_out_last = all_params[-1]["d_out"]
    d_out_pad = all_params[-1]["base_b"].shape[1]

    # Batch tile: multiple of 16 (bf16 row packing), >=2 tiles once B >= 32 so
    # the "parallel" batch axis shards across both v7x TensorCores.
    TB = max(16, min(_round_up(_cdiv(B, 2), 16), 256))
    Bp = _round_up(B, TB)
    if Bp != B:
        x = jnp.pad(x, ((0, Bp - B), (0, 0)))
    n_tiles = Bp // TB

    layer_cfgs = []
    in_specs = [pl.BlockSpec((TB, d_in0), lambda i: (i, 0))]
    operands = [x]
    flops = 0
    transcendentals = 0
    bytes_accessed = Bp * d_in0 * 4 + Bp * d_out_pad * 4
    k_max = 0
    for p in all_params:
        k_l, d_out_p = p["packed_w"].shape
        d_in = p["ln_w"].shape[1]
        G = len(p["grid_scaled"])
        k_max = max(k_max, k_l)
        layer_cfgs.append({"d_in": d_in, "k": k_l,
                           "inv_gamma": p["inv_gamma"],
                           "grid_scaled": p["grid_scaled"]})
        in_specs += [
            pl.BlockSpec((1, d_in), lambda i: (0, 0)),        # ln weight
            pl.BlockSpec((1, d_in), lambda i: (0, 0)),        # ln bias
            pl.BlockSpec((1, d_out_p), lambda i: (0, 0)),     # base bias
            pl.BlockSpec((k_l, d_out_p), lambda i: (0, 0)),   # packed W (bf16)
        ]
        operands += [p["ln_w"], p["ln_b"], p["base_b"], p["packed_w"]]
        flops += 2 * Bp * k_l * d_out_p
        transcendentals += Bp * d_in * (1 + G)
        bytes_accessed += k_l * d_out_p * 2 + (2 * d_in + d_out_p) * 4

    kernel = functools.partial(_fused_kan_kernel, layer_cfgs=tuple(layer_cfgs))
    out = pl.pallas_call(
        kernel,
        out_shape=jax.ShapeDtypeStruct((Bp, d_out_pad), jnp.float32),
        grid=(n_tiles,),
        in_specs=in_specs,
        out_specs=pl.BlockSpec((TB, d_out_pad), lambda i: (i, 0)),
        scratch_shapes=[pltpu.VMEM((TB, k_max), jnp.bfloat16)],  # basis scratch
        compiler_params=pltpu.CompilerParams(
            dimension_semantics=("parallel",)),
        cost_estimate=pl.CostEstimate(flops=flops,
                                      transcendentals=transcendentals,
                                      bytes_accessed=bytes_accessed),
    )(*operands)
    return out[:B, :d_out_last]


# ----------------------------------------------------------------------------
# Parameter construction (mirrors the PyTorch __init__ shapes / inits) and
# host-side packing of [base ; spline(g=0) ; ... ; spline(g=G-1)].
# ----------------------------------------------------------------------------
def make_layer_params(key, d_in, d_out, grid_min, grid_max, num_grids, k1, k2,
                      pad_out_to=None):
    h = (grid_max - grid_min) / num_grids
    gamma = k1 / num_grids
    extra = math.ceil(k2 * gamma / h)
    G = num_grids + 2 * extra + 1
    lo, hi = grid_min - h * extra, grid_max + h * extra
    grid_vals = [lo + (hi - lo) * i / (G - 1) for i in range(G)]

    k_bw, k_bb, k_sw = jax.random.split(key, 3)

    # nn.Linear default init
    bound = 1.0 / math.sqrt(d_in)
    base_w = jax.random.uniform(k_bw, (d_out, d_in), jnp.float32, -bound, bound)
    base_b = jax.random.uniform(k_bb, (d_out,), jnp.float32, -bound, bound)

    # kaiming_uniform_(mode='fan_in', nonlinearity='relu') on (out, in, G)
    fan_in = d_in * G
    s_bound = math.sqrt(2.0) * math.sqrt(3.0 / fan_in)
    spline_w = jax.random.uniform(k_sw, (d_out, d_in, G), jnp.float32,
                                  -s_bound, s_bound)

    # Packed weight: rows [0:d_in] = base_w^T, rows d_in + g*d_in + i = W[o,i,g]
    sp = jnp.transpose(spline_w, (2, 1, 0)).reshape(G * d_in, d_out)
    packed = jnp.concatenate([base_w.T, sp], axis=0)       # ((1+G)*Din, Dout)
    bias = base_b.reshape(1, d_out)

    if pad_out_to is not None and pad_out_to > d_out:       # lane-dense output
        packed = jnp.pad(packed, ((0, 0), (0, pad_out_to - d_out)))
        bias = jnp.pad(bias, ((0, 0), (0, pad_out_to - d_out)))

    return {
        "ln_w": jnp.ones((1, d_in), jnp.float32),
        "ln_b": jnp.zeros((1, d_in), jnp.float32),
        "base_b": bias,                                     # (1, Dout_p) f32
        "packed_w": packed.astype(jnp.bfloat16),            # (K, Dout_p) bf16
        "grid_scaled": tuple(float(g) / gamma for g in grid_vals),
        "inv_gamma": float(1.0 / gamma),
        "d_out": d_out,
        # full-precision originals for the pure-JAX reference
        "_base_w": base_w, "_base_b": base_b, "_spline_w": spline_w,
        "_grid": jnp.asarray(grid_vals, jnp.float32),
        "_gamma": gamma,
    }


# ----------------------------------------------------------------------------
# Pure-JAX reference (mirrors the PyTorch forward, incl. the LN affine)
# ----------------------------------------------------------------------------
def reference_forward(x, all_params):
    for p in all_params:
        mean = jnp.mean(x, axis=-1, keepdims=True)
        var = jnp.mean((x - mean) ** 2, axis=-1, keepdims=True)
        xn = (x - mean) / jnp.sqrt(var + 1e-5)
        xn = xn * p["ln_w"] + p["ln_b"]
        base = jax.nn.silu(x) @ p["_base_w"].T + p["_base_b"]
        g = p["_gamma"]
        basis = g ** 2 / ((xn[..., None] - p["_grid"]) ** 2 + g ** 2)
        spline = jnp.einsum("bin,oin->bo", basis, p["_spline_w"])
        x = base + spline
    return x


if __name__ == "__main__":
    layers_hidden = [32, 64, 32]
    grid_range = [0.0, 1.0]
    num_grids, k1, k2 = 5, 1, 5
    batch = 8

    key = jax.random.PRNGKey(0)
    k_x, *layer_keys = jax.random.split(key, len(layers_hidden))
    x = jax.random.normal(k_x, (batch, layers_hidden[0]), jnp.float32)

    n_layers = len(layers_hidden) - 1
    all_params = []
    for idx, (lk, d_in, d_out) in enumerate(
            zip(layer_keys, layers_hidden[:-1], layers_hidden[1:])):
        pad_to = _round_up(d_out, 128) if idx == n_layers - 1 else None
        all_params.append(
            make_layer_params(lk, d_in, d_out, grid_range[0], grid_range[1],
                              num_grids, k1, k2, pad_out_to=pad_to))

    out = jax.block_until_ready(lorentzian_kan_forward(x, all_params))
    ref = reference_forward(x, all_params)
    assert out.shape == (batch, layers_hidden[-1])
    # bf16 matmul operands + approx reciprocal -> slightly looser tolerance.
    assert jnp.allclose(out, ref, rtol=2e-2, atol=2e-2), \
        float(jnp.max(jnp.abs(out - ref)))
    print("KERNEL_OK")
</pallas_src>

<mosaic_0001>
module attributes {stable_mosaic.version = 11 : i64} {
  func.func @_fused_kan_kernel(%arg0: i32, %arg1: memref<16x32xf32, #tpu.memory_space<vmem>>, %arg2: memref<1x32xf32, #tpu.memory_space<vmem>>, %arg3: memref<1x32xf32, #tpu.memory_space<vmem>>, %arg4: memref<1x64xf32, #tpu.memory_space<vmem>>, %arg5: memref<544x64xbf16, #tpu.memory_space<vmem>>, %arg6: memref<1x64xf32, #tpu.memory_space<vmem>>, %arg7: memref<1x64xf32, #tpu.memory_space<vmem>>, %arg8: memref<1x128xf32, #tpu.memory_space<vmem>>, %arg9: memref<1088x128xbf16, #tpu.memory_space<vmem>>, %arg10: memref<16x128xf32, #tpu.memory_space<vmem>>, %arg11: memref<16x1088xbf16, #tpu.memory_space<vmem>>) attributes {dimension_semantics = [#tpu.dimension_semantics<parallel>], iteration_bounds = array<i64: 1>, scalar_prefetch = 0 : i64, scratch_operands = 1 : i64, tpu.core_type = #tpu.core_type<tc>, window_params = [{transform_indices = @transform_0, window_bounds = array<i64: 16, 32>}, {pipeline_mode = #tpu.pipeline_mode<synchronous>, transform_indices = @transform_1, window_bounds = array<i64: 1, 32>}, {pipeline_mode = #tpu.pipeline_mode<synchronous>, transform_indices = @transform_2, window_bounds = array<i64: 1, 32>}, {pipeline_mode = #tpu.pipeline_mode<synchronous>, transform_indices = @transform_3, window_bounds = array<i64: 1, 64>}, {pipeline_mode = #tpu.pipeline_mode<synchronous>, transform_indices = @transform_4, window_bounds = array<i64: 544, 64>}, {pipeline_mode = #tpu.pipeline_mode<synchronous>, transform_indices = @transform_5, window_bounds = array<i64: 1, 64>}, {pipeline_mode = #tpu.pipeline_mode<synchronous>, transform_indices = @transform_6, window_bounds = array<i64: 1, 64>}, {pipeline_mode = #tpu.pipeline_mode<synchronous>, transform_indices = @transform_7, window_bounds = array<i64: 1, 128>}, {pipeline_mode = #tpu.pipeline_mode<synchronous>, transform_indices = @transform_8, window_bounds = array<i64: 1088, 128>}, {transform_indices = @transform_9, window_bounds = array<i64: 16, 128>}]} {
    %c0 = arith.constant 0 : index
    %c0_0 = arith.constant 0 : index
    %0 = vector.load %arg1[%c0, %c0_0] : memref<16x32xf32, #tpu.memory_space<vmem>>, vector<16x32xf32>
    %1 = arith.negf %0 : vector<16x32xf32>
    %2 = math.exp %1 : vector<16x32xf32>
    %cst = arith.constant 1.000000e+00 : f32
    %3 = vector.broadcast %cst : f32 to vector<16x32xf32>
    %4 = arith.addf %3, %2 : vector<16x32xf32>
    %5 = arith.divf %3, %4 : vector<16x32xf32>
    %6 = arith.mulf %0, %5 : vector<16x32xf32>
    %7 = arith.truncf %6 : vector<16x32xf32> to vector<16x32xbf16>
    %c0_1 = arith.constant 0 : index
    %c0_2 = arith.constant 0 : index
    %8 = vector.load %arg11[%c0_1, %c0_2] : memref<16x1088xbf16, #tpu.memory_space<vmem>>, vector<16x32xbf16>
    tpu.vector_store %arg11[%c0_1, %c0_2], %7 {strides = array<i32>} : memref<16x1088xbf16, #tpu.memory_space<vmem>>, vector<16x32xbf16>,
    %cst_3 = arith.constant dense<0.000000e+00> : vector<16xf32>
    %9 = vector.multi_reduction <add>, %0, %cst_3 [1] : vector<16x32xf32> to vector<16xf32>
    %10 = vector.shape_cast %9 : vector<16xf32> to vector<16x1xf32>
    %cst_4 = arith.constant 3.200000e+01 : f32
    %11 = vector.broadcast %cst_4 : f32 to vector<16x1xf32>
    %12 = arith.divf %10, %11 : vector<16x1xf32>
    %13 = vector.broadcast %12 : vector<16x1xf32> to vector<16x32xf32>
    %14 = arith.subf %0, %13 : vector<16x32xf32>
    %15 = arith.mulf %14, %14 : vector<16x32xf32>
    %cst_5 = arith.constant dense<0.000000e+00> : vector<16xf32>
    %16 = vector.multi_reduction <add>, %15, %cst_5 [1] : vector<16x32xf32> to vector<16xf32>
    %17 = vector.shape_cast %16 : vector<16xf32> to vector<16x1xf32>
    %cst_6 = arith.constant 3.200000e+01 : f32
    %18 = vector.broadcast %cst_6 : f32 to vector<16x1xf32>
    %19 = arith.divf %17, %18 : vector<16x1xf32>
    %20 = vector.broadcast %12 : vector<16x1xf32> to vector<16x32xf32>
    %21 = arith.subf %0, %20 : vector<16x32xf32>
    %cst_7 = arith.constant 9.99999974E-6 : f32
    %22 = vector.broadcast %cst_7 : f32 to vector<16x1xf32>
    %23 = arith.addf %19, %22 : vector<16x1xf32>
    %24 = math.rsqrt %23 : vector<16x1xf32>
    %25 = vector.broadcast %24 : vector<16x1xf32> to vector<16x32xf32>
    %26 = arith.mulf %21, %25 : vector<16x32xf32>
    %c0_8 = arith.constant 0 : index
    %c0_9 = arith.constant 0 : index
    %27 = vector.load %arg2[%c0_8, %c0_9] : memref<1x32xf32, #tpu.memory_space<vmem>>, vector<1x32xf32>
    %28 = vector.broadcast %27 : vector<1x32xf32> to vector<16x32xf32>
    %29 = arith.mulf %26, %28 : vector<16x32xf32>
    %c0_10 = arith.constant 0 : index
    %c0_11 = arith.constant 0 : index
    %30 = vector.load %arg3[%c0_10, %c0_11] : memref<1x32xf32, #tpu.memory_space<vmem>>, vector<1x32xf32>
    %31 = vector.broadcast %30 : vector<1x32xf32> to vector<16x32xf32>
    %32 = arith.addf %29, %31 : vector<16x32xf32>
    %cst_12 = arith.constant 5.000000e+00 : f32
    %33 = vector.broadcast %cst_12 : f32 to vector<16x32xf32>
    %34 = arith.mulf %32, %33 : vector<16x32xf32>
    %cst_13 = arith.constant -5.000000e+00 : f32
    %35 = vector.broadcast %cst_13 : f32 to vector<16x32xf32>
    %36 = arith.subf %34, %35 : vector<16x32xf32>
    %37 = arith.mulf %36, %36 : vector<16x32xf32>
    %cst_14 = arith.constant 1.000000e+00 : f32
    %38 = vector.broadcast %cst_14 : f32 to vector<16x32xf32>
    %39 = arith.addf %37, %38 : vector<16x32xf32>
    %40 = tpu.reciprocal %39 {approx = true} : vector<16x32xf32> -> vector<16x32xf32>
    %41 = arith.truncf %40 : vector<16x32xf32> to vector<16x32xbf16>
    %c0_15 = arith.constant 0 : index
    %c32 = arith.constant 32 : index
    %42 = vector.load %arg11[%c0_15, %c32] : memref<16x1088xbf16, #tpu.memory_space<vmem>>, vector<16x32xbf16>
    tpu.vector_store %arg11[%c0_15, %c32], %41 {strides = array<i32>} : memref<16x1088xbf16, #tpu.memory_space<vmem>>, vector<16x32xbf16>,
    %cst_16 = arith.constant -4.000000e+00 : f32
    %43 = vector.broadcast %cst_16 : f32 to vector<16x32xf32>
    %44 = arith.subf %34, %43 : vector<16x32xf32>
    %45 = arith.mulf %44, %44 : vector<16x32xf32>
    %cst_17 = arith.constant 1.000000e+00 : f32
    %46 = vector.broadcast %cst_17 : f32 to vector<16x32xf32>
    %47 = arith.addf %45, %46 : vector<16x32xf32>
    %48 = tpu.reciprocal %47 {approx = true} : vector<16x32xf32> -> vector<16x32xf32>
    %49 = arith.truncf %48 : vector<16x32xf32> to vector<16x32xbf16>
    %c0_18 = arith.constant 0 : index
    %c64 = arith.constant 64 : index
    %50 = vector.load %arg11[%c0_18, %c64] : memref<16x1088xbf16, #tpu.memory_space<vmem>>, vector<16x32xbf16>
    tpu.vector_store %arg11[%c0_18, %c64], %49 {strides = array<i32>} : memref<16x1088xbf16, #tpu.memory_space<vmem>>, vector<16x32xbf16>,
    %cst_19 = arith.constant -3.000000e+00 : f32
    %51 = vector.broadcast %cst_19 : f32 to vector<16x32xf32>
    %52 = arith.subf %34, %51 : vector<16x32xf32>
    %53 = arith.mulf %52, %52 : vector<16x32xf32>
    %cst_20 = arith.constant 1.000000e+00 : f32
    %54 = vector.broadcast %cst_20 : f32 to vector<16x32xf32>
    %55 = arith.addf %53, %54 : vector<16x32xf32>
    %56 = tpu.reciprocal %55 {approx = true} : vector<16x32xf32> -> vector<16x32xf32>
    %57 = arith.truncf %56 : vector<16x32xf32> to vector<16x32xbf16>
    %c0_21 = arith.constant 0 : index
    %c96 = arith.constant 96 : index
    %58 = vector.load %arg11[%c0_21, %c96] : memref<16x1088xbf16, #tpu.memory_space<vmem>>, vector<16x32xbf16>
    tpu.vector_store %arg11[%c0_21, %c96], %57 {strides = array<i32>} : memref<16x1088xbf16, #tpu.memory_space<vmem>>, vector<16x32xbf16>,
    %cst_22 = arith.constant -2.000000e+00 : f32
    %59 = vector.broadcast %cst_22 : f32 to vector<16x32xf32>
    %60 = arith.subf %34, %59 : vector<16x32xf32>
    %61 = arith.mulf %60, %60 : vector<16x32xf32>
    %cst_23 = arith.constant 1.000000e+00 : f32
    %62 = vector.broadcast %cst_23 : f32 to vector<16x32xf32>
    %63 = arith.addf %61, %62 : vector<16x32xf32>
    %64 = tpu.reciprocal %63 {approx = true} : vector<16x32xf32> -> vector<16x32xf32>
    %65 = arith.truncf %64 : vector<16x32xf32> to vector<16x32xbf16>
    %c0_24 = arith.constant 0 : index
    %c128 = arith.constant 128 : index
    %66 = vector.load %arg11[%c0_24, %c128] : memref<16x1088xbf16, #tpu.memory_space<vmem>>, vector<16x32xbf16>
    tpu.vector_store %arg11[%c0_24, %c128], %65 {strides = array<i32>} : memref<16x1088xbf16, #tpu.memory_space<vmem>>, vector<16x32xbf16>,
    %cst_25 = arith.constant -1.000000e+00 : f32
    %67 = vector.broadcast %cst_25 : f32 to vector<16x32xf32>
    %68 = arith.subf %34, %67 : vector<16x32xf32>
    %69 = arith.mulf %68, %68 : vector<16x32xf32>
    %cst_26 = arith.constant 1.000000e+00 : f32
    %70 = vector.broadcast %cst_26 : f32 to vector<16x32xf32>
    %71 = arith.addf %69, %70 : vector<16x32xf32>
    %72 = tpu.reciprocal %71 {approx = true} : vector<16x32xf32> -> vector<16x32xf32>
    %73 = arith.truncf %72 : vector<16x32xf32> to vector<16x32xbf16>
    %c0_27 = arith.constant 0 : index
    %c160 = arith.constant 160 : index
    %74 = vector.load %arg11[%c0_27, %c160] : memref<16x1088xbf16, #tpu.memory_space<vmem>>, vector<16x32xbf16>
    tpu.vector_store %arg11[%c0_27, %c160], %73 {strides = array<i32>} : memref<16x1088xbf16, #tpu.memory_space<vmem>>, vector<16x32xbf16>,
    %cst_28 = arith.constant 0.000000e+00 : f32
    %75 = vector.broadcast %cst_28 : f32 to vector<16x32xf32>
    %76 = arith.subf %34, %75 : vector<16x32xf32>
    %77 = arith.mulf %76, %76 : vector<16x32xf32>
    %cst_29 = arith.constant 1.000000e+00 : f32
    %78 = vector.broadcast %cst_29 : f32 to vector<16x32xf32>
    %79 = arith.addf %77, %78 : vector<16x32xf32>
    %80 = tpu.reciprocal %79 {approx = true} : vector<16x32xf32> -> vector<16x32xf32>
    %81 = arith.truncf %80 : vector<16x32xf32> to vector<16x32xbf16>
    %c0_30 = arith.constant 0 : index
    %c192 = arith.constant 192 : index
    %82 = vector.load %arg11[%c0_30, %c192] : memref<16x1088xbf16, #tpu.memory_space<vmem>>, vector<16x32xbf16>
    tpu.vector_store %arg11[%c0_30, %c192], %81 {strides = array<i32>} : memref<16x1088xbf16, #tpu.memory_space<vmem>>, vector<16x32xbf16>,
    %cst_31 = arith.constant 1.000000e+00 : f32
    %83 = vector.broadcast %cst_31 : f32 to vector<16x32xf32>
    %84 = arith.subf %34, %83 : vector<16x32xf32>
    %85 = arith.mulf %84, %84 : vector<16x32xf32>
    %cst_32 = arith.constant 1.000000e+00 : f32
    %86 = vector.broadcast %cst_32 : f32 to vector<16x32xf32>
    %87 = arith.addf %85, %86 : vector<16x32xf32>
    %88 = tpu.reciprocal %87 {approx = true} : vector<16x32xf32> -> vector<16x32xf32>
    %89 = arith.truncf %88 : vector<16x32xf32> to vector<16x32xbf16>
    %c0_33 = arith.constant 0 : index
    %c224 = arith.constant 224 : index
    %90 = vector.load %arg11[%c0_33, %c224] : memref<16x1088xbf16, #tpu.memory_space<vmem>>, vector<16x32xbf16>
    tpu.vector_store %arg11[%c0_33, %c224], %89 {strides = array<i32>} : memref<16x1088xbf16, #tpu.memory_space<vmem>>, vector<16x32xbf16>,
    %cst_34 = arith.constant 2.000000e+00 : f32
    %91 = vector.broadcast %cst_34 : f32 to vector<16x32xf32>
    %92 = arith.subf %34, %91 : vector<16x32xf32>
    %93 = arith.mulf %92, %92 : vector<16x32xf32>
    %cst_35 = arith.constant 1.000000e+00 : f32
    %94 = vector.broadcast %cst_35 : f32 to vector<16x32xf32>
    %95 = arith.addf %93, %94 : vector<16x32xf32>
    %96 = tpu.reciprocal %95 {approx = true} : vector<16x32xf32> -> vector<16x32xf32>
    %97 = arith.truncf %96 : vector<16x32xf32> to vector<16x32xbf16>
    %c0_36 = arith.constant 0 : index
    %c256 = arith.constant 256 : index
    %98 = vector.load %arg11[%c0_36, %c256] : memref<16x1088xbf16, #tpu.memory_space<vmem>>, vector<16x32xbf16>
    tpu.vector_store %arg11[%c0_36, %c256], %97 {strides = array<i32>} : memref<16x1088xbf16, #tpu.memory_space<vmem>>, vector<16x32xbf16>,
    %cst_37 = arith.constant 3.000000e+00 : f32
    %99 = vector.broadcast %cst_37 : f32 to vector<16x32xf32>
    %100 = arith.subf %34, %99 : vector<16x32xf32>
    %101 = arith.mulf %100, %100 : vector<16x32xf32>
    %cst_38 = arith.constant 1.000000e+00 : f32
    %102 = vector.broadcast %cst_38 : f32 to vector<16x32xf32>
    %103 = arith.addf %101, %102 : vector<16x32xf32>
    %104 = tpu.reciprocal %103 {approx = true} : vector<16x32xf32> -> vector<16x32xf32>
    %105 = arith.truncf %104 : vector<16x32xf32> to vector<16x32xbf16>
    %c0_39 = arith.constant 0 : index
    %c288 = arith.constant 288 : index
    %106 = vector.load %arg11[%c0_39, %c288] : memref<16x1088xbf16, #tpu.memory_space<vmem>>, vector<16x32xbf16>
    tpu.vector_store %arg11[%c0_39, %c288], %105 {strides = array<i32>} : memref<16x1088xbf16, #tpu.memory_space<vmem>>, vector<16x32xbf16>,
    %cst_40 = arith.constant 4.000000e+00 : f32
    %107 = vector.broadcast %cst_40 : f32 to vector<16x32xf32>
    %108 = arith.subf %34, %107 : vector<16x32xf32>
    %109 = arith.mulf %108, %108 : vector<16x32xf32>
    %cst_41 = arith.constant 1.000000e+00 : f32
    %110 = vector.broadcast %cst_41 : f32 to vector<16x32xf32>
    %111 = arith.addf %109, %110 : vector<16x32xf32>
    %112 = tpu.reciprocal %111 {approx = true} : vector<16x32xf32> -> vector<16x32xf32>
    %113 = arith.truncf %112 : vector<16x32xf32> to vector<16x32xbf16>
    %c0_42 = arith.constant 0 : index
    %c320 = arith.constant 320 : index
    %114 = vector.load %arg11[%c0_42, %c320] : memref<16x1088xbf16, #tpu.memory_space<vmem>>, vector<16x32xbf16>
    tpu.vector_store %arg11[%c0_42, %c320], %113 {strides = array<i32>} : memref<16x1088xbf16, #tpu.memory_space<vmem>>, vector<16x32xbf16>,
    %cst_43 = arith.constant 5.000000e+00 : f32
    %115 = vector.broadcast %cst_43 : f32 to vector<16x32xf32>
    %116 = arith.subf %34, %115 : vector<16x32xf32>
    %117 = arith.mulf %116, %116 : vector<16x32xf32>
    %cst_44 = arith.constant 1.000000e+00 : f32
    %118 = vector.broadcast %cst_44 : f32 to vector<16x32xf32>
    %119 = arith.addf %117, %118 : vector<16x32xf32>
    %120 = tpu.reciprocal %119 {approx = true} : vector<16x32xf32> -> vector<16x32xf32>
    %121 = arith.truncf %120 : vector<16x32xf32> to vector<16x32xbf16>
    %c0_45 = arith.constant 0 : index
    %c352 = arith.constant 352 : index
    %122 = vector.load %arg11[%c0_45, %c352] : memref<16x1088xbf16, #tpu.memory_space<vmem>>, vector<16x32xbf16>
    tpu.vector_store %arg11[%c0_45, %c352], %121 {strides = array<i32>} : memref<16x1088xbf16, #tpu.memory_space<vmem>>, vector<16x32xbf16>,
    %cst_46 = arith.constant 6.000000e+00 : f32
    %123 = vector.broadcast %cst_46 : f32 to vector<16x32xf32>
    %124 = arith.subf %34, %123 : vector<16x32xf32>
    %125 = arith.mulf %124, %124 : vector<16x32xf32>
    %cst_47 = arith.constant 1.000000e+00 : f32
    %126 = vector.broadcast %cst_47 : f32 to vector<16x32xf32>
    %127 = arith.addf %125, %126 : vector<16x32xf32>
    %128 = tpu.reciprocal %127 {approx = true} : vector<16x32xf32> -> vector<16x32xf32>
    %129 = arith.truncf %128 : vector<16x32xf32> to vector<16x32xbf16>
    %c0_48 = arith.constant 0 : index
    %c384 = arith.constant 384 : index
    %130 = vector.load %arg11[%c0_48, %c384] : memref<16x1088xbf16, #tpu.memory_space<vmem>>, vector<16x32xbf16>
    tpu.vector_store %arg11[%c0_48, %c384], %129 {strides = array<i32>} : memref<16x1088xbf16, #tpu.memory_space<vmem>>, vector<16x32xbf16>,
    %cst_49 = arith.constant 7.000000e+00 : f32
    %131 = vector.broadcast %cst_49 : f32 to vector<16x32xf32>
    %132 = arith.subf %34, %131 : vector<16x32xf32>
    %133 = arith.mulf %132, %132 : vector<16x32xf32>
    %cst_50 = arith.constant 1.000000e+00 : f32
    %134 = vector.broadcast %cst_50 : f32 to vector<16x32xf32>
    %135 = arith.addf %133, %134 : vector<16x32xf32>
    %136 = tpu.reciprocal %135 {approx = true} : vector<16x32xf32> -> vector<16x32xf32>
    %137 = arith.truncf %136 : vector<16x32xf32> to vector<16x32xbf16>
    %c0_51 = arith.constant 0 : index
    %c416 = arith.constant 416 : index
    %138 = vector.load %arg11[%c0_51, %c416] : memref<16x1088xbf16, #tpu.memory_space<vmem>>, vector<16x32xbf16>
    tpu.vector_store %arg11[%c0_51, %c416], %137 {strides = array<i32>} : memref<16x1088xbf16, #tpu.memory_space<vmem>>, vector<16x32xbf16>,
    %cst_52 = arith.constant 8.000000e+00 : f32
    %139 = vector.broadcast %cst_52 : f32 to vector<16x32xf32>
    %140 = arith.subf %34, %139 : vector<16x32xf32>
    %141 = arith.mulf %140, %140 : vector<16x32xf32>
    %cst_53 = arith.constant 1.000000e+00 : f32
    %142 = vector.broadcast %cst_53 : f32 to vector<16x32xf32>
    %143 = arith.addf %141, %142 : vector<16x32xf32>
    %144 = tpu.reciprocal %143 {approx = true} : vector<16x32xf32> -> vector<16x32xf32>
    %145 = arith.truncf %144 : vector<16x32xf32> to vector<16x32xbf16>
    %c0_54 = arith.constant 0 : index
    %c448 = arith.constant 448 : index
    %146 = vector.load %arg11[%c0_54, %c448] : memref<16x1088xbf16, #tpu.memory_space<vmem>>, vector<16x32xbf16>
    tpu.vector_store %arg11[%c0_54, %c448], %145 {strides = array<i32>} : memref<16x1088xbf16, #tpu.memory_space<vmem>>, vector<16x32xbf16>,
    %cst_55 = arith.constant 9.000000e+00 : f32
    %147 = vector.broadcast %cst_55 : f32 to vector<16x32xf32>
    %148 = arith.subf %34, %147 : vector<16x32xf32>
    %149 = arith.mulf %148, %148 : vector<16x32xf32>
    %cst_56 = arith.constant 1.000000e+00 : f32
    %150 = vector.broadcast %cst_56 : f32 to vector<16x32xf32>
    %151 = arith.addf %149, %150 : vector<16x32xf32>
    %152 = tpu.reciprocal %151 {approx = true} : vector<16x32xf32> -> vector<16x32xf32>
    %153 = arith.truncf %152 : vector<16x32xf32> to vector<16x32xbf16>
    %c0_57 = arith.constant 0 : index
    %c480 = arith.constant 480 : index
    %154 = vector.load %arg11[%c0_57, %c480] : memref<16x1088xbf16, #tpu.memory_space<vmem>>, vector<16x32xbf16>
    tpu.vector_store %arg11[%c0_57, %c480], %153 {strides = array<i32>} : memref<16x1088xbf16, #tpu.memory_space<vmem>>, vector<16x32xbf16>,
    %cst_58 = arith.constant 1.000000e+01 : f32
    %155 = vector.broadcast %cst_58 : f32 to vector<16x32xf32>
    %156 = arith.subf %34, %155 : vector<16x32xf32>
    %157 = arith.mulf %156, %156 : vector<16x32xf32>
    %cst_59 = arith.constant 1.000000e+00 : f32
    %158 = vector.broadcast %cst_59 : f32 to vector<16x32xf32>
    %159 = arith.addf %157, %158 : vector<16x32xf32>
    %160 = tpu.reciprocal %159 {approx = true} : vector<16x32xf32> -> vector<16x32xf32>
    %161 = arith.truncf %160 : vector<16x32xf32> to vector<16x32xbf16>
    %c0_60 = arith.constant 0 : index
    %c512 = arith.constant 512 : index
    %162 = vector.load %arg11[%c0_60, %c512] : memref<16x1088xbf16, #tpu.memory_space<vmem>>, vector<16x32xbf16>
    tpu.vector_store %arg11[%c0_60, %c512], %161 {strides = array<i32>} : memref<16x1088xbf16, #tpu.memory_space<vmem>>, vector<16x32xbf16>,
    %c0_61 = arith.constant 0 : index
    %c0_62 = arith.constant 0 : index
    %163 = vector.load %arg11[%c0_61, %c0_62] : memref<16x1088xbf16, #tpu.memory_space<vmem>>, vector<16x544xbf16>
    %c0_63 = arith.constant 0 : index
    %c0_64 = arith.constant 0 : index
    %164 = vector.load %arg5[%c0_63, %c0_64] : memref<544x64xbf16, #tpu.memory_space<vmem>>, vector<544x64xbf16>
    %cst_65 = arith.constant dense<0.000000e+00> : vector<16x64xf32>
    %165 = tpu.matmul %163, %164, %cst_65 {dimension_numbers = #tpu.dot_dimension_numbers<[1], [0], [0], [1], [0, 0, 1, 1], [], []>} : vector<16x544xbf16>, vector<544x64xbf16>, vector<16x64xf32> -> vector<16x64xf32>
    %c0_66 = arith.constant 0 : index
    %c0_67 = arith.constant 0 : index
    %166 = vector.load %arg4[%c0_66, %c0_67] : memref<1x64xf32, #tpu.memory_space<vmem>>, vector<1x64xf32>
    %167 = vector.broadcast %166 : vector<1x64xf32> to vector<16x64xf32>
    %168 = arith.addf %165, %167 : vector<16x64xf32>
    %169 = arith.negf %168 : vector<16x64xf32>
    %170 = math.exp %169 : vector<16x64xf32>
    %cst_68 = arith.constant 1.000000e+00 : f32
    %171 = vector.broadcast %cst_68 : f32 to vector<16x64xf32>
    %172 = arith.addf %171, %170 : vector<16x64xf32>
    %173 = arith.divf %171, %172 : vector<16x64xf32>
    %174 = arith.mulf %168, %173 : vector<16x64xf32>
    %175 = arith.truncf %174 : vector<16x64xf32> to vector<16x64xbf16>
    %c0_69 = arith.constant 0 : index
    %c0_70 = arith.constant 0 : index
    %176 = vector.load %arg11[%c0_69, %c0_70] : memref<16x1088xbf16, #tpu.memory_space<vmem>>, vector<16x64xbf16>
    tpu.vector_store %arg11[%c0_69, %c0_70], %175 {strides = array<i32>} : memref<16x1088xbf16, #tpu.memory_space<vmem>>, vector<16x64xbf16>,
    %cst_71 = arith.constant dense<0.000000e+00> : vector<16xf32>
    %177 = vector.multi_reduction <add>, %168, %cst_71 [1] : vector<16x64xf32> to vector<16xf32>
    %178 = vector.shape_cast %177 : vector<16xf32> to vector<16x1xf32>
    %cst_72 = arith.constant 6.400000e+01 : f32
    %179 = vector.broadcast %cst_72 : f32 to vector<16x1xf32>
    %180 = arith.divf %178, %179 : vector<16x1xf32>
    %181 = vector.broadcast %180 : vector<16x1xf32> to vector<16x64xf32>
    %182 = arith.subf %168, %181 : vector<16x64xf32>
    %183 = arith.mulf %182, %182 : vector<16x64xf32>
    %cst_73 = arith.constant dense<0.000000e+00> : vector<16xf32>
    %184 = vector.multi_reduction <add>, %183, %cst_73 [1] : vector<16x64xf32> to vector<16xf32>
    %185 = vector.shape_cast %184 : vector<16xf32> to vector<16x1xf32>
    %cst_74 = arith.constant 6.400000e+01 : f32
    %186 = vector.broadcast %cst_74 : f32 to vector<16x1xf32>
    %187 = arith.divf %185, %186 : vector<16x1xf32>
    %188 = vector.broadcast %180 : vector<16x1xf32> to vector<16x64xf32>
    %189 = arith.subf %168, %188 : vector<16x64xf32>
    %cst_75 = arith.constant 9.99999974E-6 : f32
    %190 = vector.broadcast %cst_75 : f32 to vector<16x1xf32>
    %191 = arith.addf %187, %190 : vector<16x1xf32>
    %192 = math.rsqrt %191 : vector<16x1xf32>
    %193 = vector.broadcast %192 : vector<16x1xf32> to vector<16x64xf32>
    %194 = arith.mulf %189, %193 : vector<16x64xf32>
    %c0_76 = arith.constant 0 : index
    %c0_77 = arith.constant 0 : index
    %195 = vector.load %arg6[%c0_76, %c0_77] : memref<1x64xf32, #tpu.memory_space<vmem>>, vector<1x64xf32>
    %196 = vector.broadcast %195 : vector<1x64xf32> to vector<16x64xf32>
    %197 = arith.mulf %194, %196 : vector<16x64xf32>
    %c0_78 = arith.constant 0 : index
    %c0_79 = arith.constant 0 : index
    %198 = vector.load %arg7[%c0_78, %c0_79] : memref<1x64xf32, #tpu.memory_space<vmem>>, vector<1x64xf32>
    %199 = vector.broadcast %198 : vector<1x64xf32> to vector<16x64xf32>
    %200 = arith.addf %197, %199 : vector<16x64xf32>
    %cst_80 = arith.constant 5.000000e+00 : f32
    %201 = vector.broadcast %cst_80 : f32 to vector<16x64xf32>
    %202 = arith.mulf %200, %201 : vector<16x64xf32>
    %cst_81 = arith.constant -5.000000e+00 : f32
    %203 = vector.broadcast %cst_81 : f32 to vector<16x64xf32>
    %204 = arith.subf %202, %203 : vector<16x64xf32>
    %205 = arith.mulf %204, %204 : vector<16x64xf32>
    %cst_82 = arith.constant 1.000000e+00 : f32
    %206 = vector.broadcast %cst_82 : f32 to vector<16x64xf32>
    %207 = arith.addf %205, %206 : vector<16x64xf32>
    %208 = tpu.reciprocal %207 {approx = true} : vector<16x64xf32> -> vector<16x64xf32>
    %209 = arith.truncf %208 : vector<16x64xf32> to vector<16x64xbf16>
    %c0_83 = arith.constant 0 : index
    %c64_84 = arith.constant 64 : index
    %210 = vector.load %arg11[%c0_83, %c64_84] : memref<16x1088xbf16, #tpu.memory_space<vmem>>, vector<16x64xbf16>
    tpu.vector_store %arg11[%c0_83, %c64_84], %209 {strides = array<i32>} : memref<16x1088xbf16, #tpu.memory_space<vmem>>, vector<16x64xbf16>,
    %cst_85 = arith.constant -4.000000e+00 : f32
    %211 = vector.broadcast %cst_85 : f32 to vector<16x64xf32>
    %212 = arith.subf %202, %211 : vector<16x64xf32>
    %213 = arith.mulf %212, %212 : vector<16x64xf32>
    %cst_86 = arith.constant 1.000000e+00 : f32
    %214 = vector.broadcast %cst_86 : f32 to vector<16x64xf32>
    %215 = arith.addf %213, %214 : vector<16x64xf32>
    %216 = tpu.reciprocal %215 {approx = true} : vector<16x64xf32> -> vector<16x64xf32>
    %217 = arith.truncf %216 : vector<16x64xf32> to vector<16x64xbf16>
    %c0_87 = arith.constant 0 : index
    %c128_88 = arith.constant 128 : index
    %218 = vector.load %arg11[%c0_87, %c128_88] : memref<16x1088xbf16, #tpu.memory_space<vmem>>, vector<16x64xbf16>
    tpu.vector_store %arg11[%c0_87, %c128_88], %217 {strides = array<i32>} : memref<16x1088xbf16, #tpu.memory_space<vmem>>, vector<16x64xbf16>,
    %cst_89 = arith.constant -3.000000e+00 : f32
    %219 = vector.broadcast %cst_89 : f32 to vector<16x64xf32>
    %220 = arith.subf %202, %219 : vector<16x64xf32>
    %221 = arith.mulf %220, %220 : vector<16x64xf32>
    %cst_90 = arith.constant 1.000000e+00 : f32
    %222 = vector.broadcast %cst_90 : f32 to vector<16x64xf32>
    %223 = arith.addf %221, %222 : vector<16x64xf32>
    %224 = tpu.reciprocal %223 {approx = true} : vector<16x64xf32> -> vector<16x64xf32>
    %225 = arith.truncf %224 : vector<16x64xf32> to vector<16x64xbf16>
    %c0_91 = arith.constant 0 : index
    %c192_92 = arith.constant 192 : index
    %226 = vector.load %arg11[%c0_91, %c192_92] : memref<16x1088xbf16, #tpu.memory_space<vmem>>, vector<16x64xbf16>
    tpu.vector_store %arg11[%c0_91, %c192_92], %225 {strides = array<i32>} : memref<16x1088xbf16, #tpu.memory_space<vmem>>, vector<16x64xbf16>,
    %cst_93 = arith.constant -2.000000e+00 : f32
    %227 = vector.broadcast %cst_93 : f32 to vector<16x64xf32>
    %228 = arith.subf %202, %227 : vector<16x64xf32>
    %229 = arith.mulf %228, %228 : vector<16x64xf32>
    %cst_94 = arith.constant 1.000000e+00 : f32
    %230 = vector.broadcast %cst_94 : f32 to vector<16x64xf32>
    %231 = arith.addf %229, %230 : vector<16x64xf32>
    %232 = tpu.reciprocal %231 {approx = true} : vector<16x64xf32> -> vector<16x64xf32>
    %233 = arith.truncf %232 : vector<16x64xf32> to vector<16x64xbf16>
    %c0_95 = arith.constant 0 : index
    %c256_96 = arith.constant 256 : index
    %234 = vector.load %arg11[%c0_95, %c256_96] : memref<16x1088xbf16, #tpu.memory_space<vmem>>, vector<16x64xbf16>
    tpu.vector_store %arg11[%c0_95, %c256_96], %233 {strides = array<i32>} : memref<16x1088xbf16, #tpu.memory_space<vmem>>, vector<16x64xbf16>,
    %cst_97 = arith.constant -1.000000e+00 : f32
    %235 = vector.broadcast %cst_97 : f32 to vector<16x64xf32>
    %236 = arith.subf %202, %235 : vector<16x64xf32>
    %237 = arith.mulf %236, %236 : vector<16x64xf32>
    %cst_98 = arith.constant 1.000000e+00 : f32
    %238 = vector.broadcast %cst_98 : f32 to vector<16x64xf32>
    %239 = arith.addf %237, %238 : vector<16x64xf32>
    %240 = tpu.reciprocal %239 {approx = true} : vector<16x64xf32> -> vector<16x64xf32>
    %241 = arith.truncf %240 : vector<16x64xf32> to vector<16x64xbf16>
    %c0_99 = arith.constant 0 : index
    %c320_100 = arith.constant 320 : index
    %242 = vector.load %arg11[%c0_99, %c320_100] : memref<16x1088xbf16, #tpu.memory_space<vmem>>, vector<16x64xbf16>
    tpu.vector_store %arg11[%c0_99, %c320_100], %241 {strides = array<i32>} : memref<16x1088xbf16, #tpu.memory_space<vmem>>, vector<16x64xbf16>,
    %cst_101 = arith.constant 0.000000e+00 : f32
    %243 = vector.broadcast %cst_101 : f32 to vector<16x64xf32>
    %244 = arith.subf %202, %243 : vector<16x64xf32>
    %245 = arith.mulf %244, %244 : vector<16x64xf32>
    %cst_102 = arith.constant 1.000000e+00 : f32
    %246 = vector.broadcast %cst_102 : f32 to vector<16x64xf32>
    %247 = arith.addf %245, %246 : vector<16x64xf32>
    %248 = tpu.reciprocal %247 {approx = true} : vector<16x64xf32> -> vector<16x64xf32>
    %249 = arith.truncf %248 : vector<16x64xf32> to vector<16x64xbf16>
    %c0_103 = arith.constant 0 : index
    %c384_104 = arith.constant 384 : index
    %250 = vector.load %arg11[%c0_103, %c384_104] : memref<16x1088xbf16, #tpu.memory_space<vmem>>, vector<16x64xbf16>
    tpu.vector_store %arg11[%c0_103, %c384_104], %249 {strides = array<i32>} : memref<16x1088xbf16, #tpu.memory_space<vmem>>, vector<16x64xbf16>,
    %cst_105 = arith.constant 1.000000e+00 : f32
    %251 = vector.broadcast %cst_105 : f32 to vector<16x64xf32>
    %252 = arith.subf %202, %251 : vector<16x64xf32>
    %253 = arith.mulf %252, %252 : vector<16x64xf32>
    %cst_106 = arith.constant 1.000000e+00 : f32
    %254 = vector.broadcast %cst_106 : f32 to vector<16x64xf32>
    %255 = arith.addf %253, %254 : vector<16x64xf32>
    %256 = tpu.reciprocal %255 {approx = true} : vector<16x64xf32> -> vector<16x64xf32>
    %257 = arith.truncf %256 : vector<16x64xf32> to vector<16x64xbf16>
    %c0_107 = arith.constant 0 : index
    %c448_108 = arith.constant 448 : index
    %258 = vector.load %arg11[%c0_107, %c448_108] : memref<16x1088xbf16, #tpu.memory_space<vmem>>, vector<16x64xbf16>
    tpu.vector_store %arg11[%c0_107, %c448_108], %257 {strides = array<i32>} : memref<16x1088xbf16, #tpu.memory_space<vmem>>, vector<16x64xbf16>,
    %cst_109 = arith.constant 2.000000e+00 : f32
    %259 = vector.broadcast %cst_109 : f32 to vector<16x64xf32>
    %260 = arith.subf %202, %259 : vector<16x64xf32>
    %261 = arith.mulf %260, %260 : vector<16x64xf32>
    %cst_110 = arith.constant 1.000000e+00 : f32
    %262 = vector.broadcast %cst_110 : f32 to vector<16x64xf32>
    %263 = arith.addf %261, %262 : vector<16x64xf32>
    %264 = tpu.reciprocal %263 {approx = true} : vector<16x64xf32> -> vector<16x64xf32>
    %265 = arith.truncf %264 : vector<16x64xf32> to vector<16x64xbf16>
    %c0_111 = arith.constant 0 : index
    %c512_112 = arith.constant 512 : index
    %266 = vector.load %arg11[%c0_111, %c512_112] : memref<16x1088xbf16, #tpu.memory_space<vmem>>, vector<16x64xbf16>
    tpu.vector_store %arg11[%c0_111, %c512_112], %265 {strides = array<i32>} : memref<16x1088xbf16, #tpu.memory_space<vmem>>, vector<16x64xbf16>,
    %cst_113 = arith.constant 3.000000e+00 : f32
    %267 = vector.broadcast %cst_113 : f32 to vector<16x64xf32>
    %268 = arith.subf %202, %267 : vector<16x64xf32>
    %269 = arith.mulf %268, %268 : vector<16x64xf32>
    %cst_114 = arith.constant 1.000000e+00 : f32
    %270 = vector.broadcast %cst_114 : f32 to vector<16x64xf32>
    %271 = arith.addf %269, %270 : vector<16x64xf32>
    %272 = tpu.reciprocal %271 {approx = true} : vector<16x64xf32> -> vector<16x64xf32>
    %273 = arith.truncf %272 : vector<16x64xf32> to vector<16x64xbf16>
    %c0_115 = arith.constant 0 : index
    %c576 = arith.constant 576 : index
    %274 = vector.load %arg11[%c0_115, %c576] : memref<16x1088xbf16, #tpu.memory_space<vmem>>, vector<16x64xbf16>
    tpu.vector_store %arg11[%c0_115, %c576], %273 {strides = array<i32>} : memref<16x1088xbf16, #tpu.memory_space<vmem>>, vector<16x64xbf16>,
    %cst_116 = arith.constant 4.000000e+00 : f32
    %275 = vector.broadcast %cst_116 : f32 to vector<16x64xf32>
    %276 = arith.subf %202, %275 : vector<16x64xf32>
    %277 = arith.mulf %276, %276 : vector<16x64xf32>
    %cst_117 = arith.constant 1.000000e+00 : f32
    %278 = vector.broadcast %cst_117 : f32 to vector<16x64xf32>
    %279 = arith.addf %277, %278 : vector<16x64xf32>
    %280 = tpu.reciprocal %279 {approx = true} : vector<16x64xf32> -> vector<16x64xf32>
    %281 = arith.truncf %280 : vector<16x64xf32> to vector<16x64xbf16>
    %c0_118 = arith.constant 0 : index
    %c640 = arith.constant 640 : index
    %282 = vector.load %arg11[%c0_118, %c640] : memref<16x1088xbf16, #tpu.memory_space<vmem>>, vector<16x64xbf16>
    tpu.vector_store %arg11[%c0_118, %c640], %281 {strides = array<i32>} : memref<16x1088xbf16, #tpu.memory_space<vmem>>, vector<16x64xbf16>,
    %cst_119 = arith.constant 5.000000e+00 : f32
    %283 = vector.broadcast %cst_119 : f32 to vector<16x64xf32>
    %284 = arith.subf %202, %283 : vector<16x64xf32>
    %285 = arith.mulf %284, %284 : vector<16x64xf32>
    %cst_120 = arith.constant 1.000000e+00 : f32
    %286 = vector.broadcast %cst_120 : f32 to vector<16x64xf32>
    %287 = arith.addf %285, %286 : vector<16x64xf32>
    %288 = tpu.reciprocal %287 {approx = true} : vector<16x64xf32> -> vector<16x64xf32>
    %289 = arith.truncf %288 : vector<16x64xf32> to vector<16x64xbf16>
    %c0_121 = arith.constant 0 : index
    %c704 = arith.constant 704 : index
    %290 = vector.load %arg11[%c0_121, %c704] : memref<16x1088xbf16, #tpu.memory_space<vmem>>, vector<16x64xbf16>
    tpu.vector_store %arg11[%c0_121, %c704], %289 {strides = array<i32>} : memref<16x1088xbf16, #tpu.memory_space<vmem>>, vector<16x64xbf16>,
    %cst_122 = arith.constant 6.000000e+00 : f32
    %291 = vector.broadcast %cst_122 : f32 to vector<16x64xf32>
    %292 = arith.subf %202, %291 : vector<16x64xf32>
    %293 = arith.mulf %292, %292 : vector<16x64xf32>
    %cst_123 = arith.constant 1.000000e+00 : f32
    %294 = vector.broadcast %cst_123 : f32 to vector<16x64xf32>
    %295 = arith.addf %293, %294 : vector<16x64xf32>
    %296 = tpu.reciprocal %295 {approx = true} : vector<16x64xf32> -> vector<16x64xf32>
    %297 = arith.truncf %296 : vector<16x64xf32> to vector<16x64xbf16>
    %c0_124 = arith.constant 0 : index
    %c768 = arith.constant 768 : index
    %298 = vector.load %arg11[%c0_124, %c768] : memref<16x1088xbf16, #tpu.memory_space<vmem>>, vector<16x64xbf16>
    tpu.vector_store %arg11[%c0_124, %c768], %297 {strides = array<i32>} : memref<16x1088xbf16, #tpu.memory_space<vmem>>, vector<16x64xbf16>,
    %cst_125 = arith.constant 7.000000e+00 : f32
    %299 = vector.broadcast %cst_125 : f32 to vector<16x64xf32>
    %300 = arith.subf %202, %299 : vector<16x64xf32>
    %301 = arith.mulf %300, %300 : vector<16x64xf32>
    %cst_126 = arith.constant 1.000000e+00 : f32
    %302 = vector.broadcast %cst_126 : f32 to vector<16x64xf32>
    %303 = arith.addf %301, %302 : vector<16x64xf32>
    %304 = tpu.reciprocal %303 {approx = true} : vector<16x64xf32> -> vector<16x64xf32>
    %305 = arith.truncf %304 : vector<16x64xf32> to vector<16x64xbf16>
    %c0_127 = arith.constant 0 : index
    %c832 = arith.constant 832 : index
    %306 = vector.load %arg11[%c0_127, %c832] : memref<16x1088xbf16, #tpu.memory_space<vmem>>, vector<16x64xbf16>
    tpu.vector_store %arg11[%c0_127, %c832], %305 {strides = array<i32>} : memref<16x1088xbf16, #tpu.memory_space<vmem>>, vector<16x64xbf16>,
    %cst_128 = arith.constant 8.000000e+00 : f32
    %307 = vector.broadcast %cst_128 : f32 to vector<16x64xf32>
    %308 = arith.subf %202, %307 : vector<16x64xf32>
    %309 = arith.mulf %308, %308 : vector<16x64xf32>
    %cst_129 = arith.constant 1.000000e+00 : f32
    %310 = vector.broadcast %cst_129 : f32 to vector<16x64xf32>
    %311 = arith.addf %309, %310 : vector<16x64xf32>
    %312 = tpu.reciprocal %311 {approx = true} : vector<16x64xf32> -> vector<16x64xf32>
    %313 = arith.truncf %312 : vector<16x64xf32> to vector<16x64xbf16>
    %c0_130 = arith.constant 0 : index
    %c896 = arith.constant 896 : index
    %314 = vector.load %arg11[%c0_130, %c896] : memref<16x1088xbf16, #tpu.memory_space<vmem>>, vector<16x64xbf16>
    tpu.vector_store %arg11[%c0_130, %c896], %313 {strides = array<i32>} : memref<16x1088xbf16, #tpu.memory_space<vmem>>, vector<16x64xbf16>,
    %cst_131 = arith.constant 9.000000e+00 : f32
    %315 = vector.broadcast %cst_131 : f32 to vector<16x64xf32>
    %316 = arith.subf %202, %315 : vector<16x64xf32>
    %317 = arith.mulf %316, %316 : vector<16x64xf32>
    %cst_132 = arith.constant 1.000000e+00 : f32
    %318 = vector.broadcast %cst_132 : f32 to vector<16x64xf32>
    %319 = arith.addf %317, %318 : vector<16x64xf32>
    %320 = tpu.reciprocal %319 {approx = true} : vector<16x64xf32> -> vector<16x64xf32>
    %321 = arith.truncf %320 : vector<16x64xf32> to vector<16x64xbf16>
    %c0_133 = arith.constant 0 : index
    %c960 = arith.constant 960 : index
    %322 = vector.load %arg11[%c0_133, %c960] : memref<16x1088xbf16, #tpu.memory_space<vmem>>, vector<16x64xbf16>
    tpu.vector_store %arg11[%c0_133, %c960], %321 {strides = array<i32>} : memref<16x1088xbf16, #tpu.memory_space<vmem>>, vector<16x64xbf16>,
    %cst_134 = arith.constant 1.000000e+01 : f32
    %323 = vector.broadcast %cst_134 : f32 to vector<16x64xf32>
    %324 = arith.subf %202, %323 : vector<16x64xf32>
    %325 = arith.mulf %324, %324 : vector<16x64xf32>
    %cst_135 = arith.constant 1.000000e+00 : f32
    %326 = vector.broadcast %cst_135 : f32 to vector<16x64xf32>
    %327 = arith.addf %325, %326 : vector<16x64xf32>
    %328 = tpu.reciprocal %327 {approx = true} : vector<16x64xf32> -> vector<16x64xf32>
    %329 = arith.truncf %328 : vector<16x64xf32> to vector<16x64xbf16>
    %c0_136 = arith.constant 0 : index
    %c1024 = arith.constant 1024 : index
    %330 = vector.load %arg11[%c0_136, %c1024] : memref<16x1088xbf16, #tpu.memory_space<vmem>>, vector<16x64xbf16>
    tpu.vector_store %arg11[%c0_136, %c1024], %329 {strides = array<i32>} : memref<16x1088xbf16, #tpu.memory_space<vmem>>, vector<16x64xbf16>,
    %c0_137 = arith.constant 0 : index
    %c0_138 = arith.constant 0 : index
    %331 = vector.load %arg11[%c0_137, %c0_138] : memref<16x1088xbf16, #tpu.memory_space<vmem>>, vector<16x1088xbf16>
    %c0_139 = arith.constant 0 : index
    %c0_140 = arith.constant 0 : index
    %332 = vector.load %arg9[%c0_139, %c0_140] : memref<1088x128xbf16, #tpu.memory_space<vmem>>, vector<1088x128xbf16>
    %cst_141 = arith.constant dense<0.000000e+00> : vector<16x128xf32>
    %333 = tpu.matmul %331, %332, %cst_141 {dimension_numbers = #tpu.dot_dimension_numbers<[1], [0], [0], [1], [0, 0, 1, 1], [], []>} : vector<16x1088xbf16>, vector<1088x128xbf16>, vector<16x128xf32> -> vector<16x128xf32>
    %c0_142 = arith.constant 0 : index
    %c0_143 = arith.constant 0 : index
    %334 = vector.load %arg8[%c0_142, %c0_143] : memref<1x128xf32, #tpu.memory_space<vmem>>, vector<1x128xf32>
    %335 = vector.broadcast %334 : vector<1x128xf32> to vector<16x128xf32>
    %336 = arith.addf %333, %335 : vector<16x128xf32>
    %c0_144 = arith.constant 0 : index
    %c0_145 = arith.constant 0 : index
    %337 = vector.load %arg10[%c0_144, %c0_145] : memref<16x128xf32, #tpu.memory_space<vmem>>, vector<16x128xf32>
    tpu.vector_store %arg10[%c0_144, %c0_145], %336 {strides = array<i32>} : memref<16x128xf32, #tpu.memory_space<vmem>>, vector<16x128xf32>,
    return
  }
  func.func @transform_0(%arg0: i32) -> (i32, i32) {
    %c0_i32 = arith.constant 0 : i32
    %c0_i32_0 = arith.constant 0 : i32
    return %arg0, %c0_i32 : i32, i32
  }
  func.func @transform_1(%arg0: i32) -> (i32, i32) {
    %c0_i32 = arith.constant 0 : i32
    %c0_i32_0 = arith.constant 0 : i32
    %c0_i32_1 = arith.constant 0 : i32
    return %c0_i32, %c0_i32_0 : i32, i32
  }
  func.func @transform_2(%arg0: i32) -> (i32, i32) {
    %c0_i32 = arith.constant 0 : i32
    %c0_i32_0 = arith.constant 0 : i32
    %c0_i32_1 = arith.constant 0 : i32
    return %c0_i32, %c0_i32_0 : i32, i32
  }
  func.func @transform_3(%arg0: i32) -> (i32, i32) {
    %c0_i32 = arith.constant 0 : i32
    %c0_i32_0 = arith.constant 0 : i32
    %c0_i32_1 = arith.constant 0 : i32
    return %c0_i32, %c0_i32_0 : i32, i32
  }
  func.func @transform_4(%arg0: i32) -> (i32, i32) {
    %c0_i32 = arith.constant 0 : i32
    %c0_i32_0 = arith.constant 0 : i32
    %c0_i32_1 = arith.constant 0 : i32
    return %c0_i32, %c0_i32_0 : i32, i32
  }
  func.func @transform_5(%arg0: i32) -> (i32, i32) {
    %c0_i32 = arith.constant 0 : i32
    %c0_i32_0 = arith.constant 0 : i32
    %c0_i32_1 = arith.constant 0 : i32
    return %c0_i32, %c0_i32_0 : i32, i32
  }
  func.func @transform_6(%arg0: i32) -> (i32, i32) {
    %c0_i32 = arith.constant 0 : i32
    %c0_i32_0 = arith.constant 0 : i32
    %c0_i32_1 = arith.constant 0 : i32
    return %c0_i32, %c0_i32_0 : i32, i32
  }
  func.func @transform_7(%arg0: i32) -> (i32, i32) {
    %c0_i32 = arith.constant 0 : i32
    %c0_i32_0 = arith.constant 0 : i32
    %c0_i32_1 = arith.constant 0 : i32
    return %c0_i32, %c0_i32_0 : i32, i32
  }
  func.func @transform_8(%arg0: i32) -> (i32, i32) {
    %c0_i32 = arith.constant 0 : i32
    %c0_i32_0 = arith.constant 0 : i32
    %c0_i32_1 = arith.constant 0 : i32
    return %c0_i32, %c0_i32_0 : i32, i32
  }
  func.func @transform_9(%arg0: i32) -> (i32, i32) {
    %c0_i32 = arith.constant 0 : i32
    %c0_i32_0 = arith.constant 0 : i32
    return %arg0, %c0_i32 : i32, i32
  }
}

</mosaic_0001>

<llo_original>
// kernel: tpu_custom_call.1
$region0: #{tpu_custom_call.1}
  #allocation0 [shape = 'u32[]', space=smem, size = 0x4, offset = 0x4, fixed_abs, tag = 'smem constant byte address 0x4 - core index']
  #allocation1 [shape = 'u32[144,128]{1,0:T(1,128)}', space=vmem, size = 0x12000, scoped, tag = 'internal scratch']
  #allocation2 [shape = 'bf16[16,1088]{1,0:T(16,128)(2,1)}', space=vmem, size = 0x9000, scoped, tag = 'scratch operand']
  %s0 = inlined_call_operand.vmem [shape: f32[16,32], index: 0, kind: input, shape index: {}]
  %s1 = inlined_call_operand.vmem [shape: f32[1,32], index: 1, kind: input, shape index: {}]
  %s2 = inlined_call_operand.vmem [shape: f32[1,32], index: 2, kind: input, shape index: {}]
  %s3 = inlined_call_operand.vmem [shape: f32[1,64], index: 3, kind: input, shape index: {}]
  %s4 = inlined_call_operand.vmem [shape: bf16[544,64], index: 4, kind: input, shape index: {}]
  %s5 = inlined_call_operand.vmem [shape: f32[1,64], index: 5, kind: input, shape index: {}]
  %s6 = inlined_call_operand.vmem [shape: f32[1,64], index: 6, kind: input, shape index: {}]
  %s7 = inlined_call_operand.vmem [shape: f32[1,128], index: 7, kind: input, shape index: {}]
  %s8 = inlined_call_operand.hbm [shape: bf16[1088,128], index: 8, kind: input, shape index: {}]
  %s9 = inlined_call_operand.hbm [shape: f32[16,128], index: 9, kind: output, shape index: {}]
  %s10 = sld [smem:[#allocation0]]
  $region50: #{tpu_custom_call.1} parent=0
    _
  %s12 = ssub.s32 1, %s10
  %s13 = scalar_select 0, %s12, %s10
  $region1: #{tpu_custom_call.1} parent=0
    #allocation3 [shape = 'u8[278528]{0}', space=vmem, size = 0x44000, scoped, tag = 'input window, operand 8, single buffered']
    #allocation4 [shape = 's32[1]{0}', space=sflag, size = 0x4, scoped, tag = 'scoped memory for tpu_custom_call.1']
    #allocation5 [shape = 's32[1]{0}', space=sflag, size = 0x4, scoped, tag = 'scoped memory for tpu_custom_call.1']
    #allocation6 [shape = 'u8[8192]{0}', space=vmem, size = 0x2000, scoped, tag = 'output window, operand 0, single buffered']
    %14 = vsyncpa [#allocation4], 0
    %15 = vsyncpa [#allocation5], 0
    // Predicated region
    $region2: #{tpu_custom_call.1} parent=1 // pred_check
      _
    $region3: #{tpu_custom_call.1} parent=1 // pred_check_branch
      %17 = sbr.rel (0) target = $region5
    $region4: #{tpu_custom_call.1} parent=1 // pred_region
      _
    $region5: #{tpu_custom_call.1} parent=1 // pred_fallthru
      _
    // Predicated region
    $region6: #{tpu_custom_call.1} parent=1 // pred_check
      _
    $region7: #{tpu_custom_call.1} parent=1 // pred_check_branch
      %19 = sbr.rel (0) target = $region9
    $region8: #{tpu_custom_call.1} parent=1 // pred_region
      _
    $region9: #{tpu_custom_call.1} parent=1 // pred_fallthru
      _
    // Predicated region
    $region10: #{tpu_custom_call.1} parent=1 // pred_check
      _
    $region11: #{tpu_custom_call.1} parent=1 // pred_check_branch
      %21 = sbr.rel (0) target = $region13
    $region12: #{tpu_custom_call.1} parent=1 // pred_region
      _
    $region13: #{tpu_custom_call.1} parent=1 // pred_fallthru
      _
    // Predicated region
    $region14: #{tpu_custom_call.1} parent=1 // pred_check
      _
    $region15: #{tpu_custom_call.1} parent=1 // pred_check_branch
      %23 = sbr.rel (0) target = $region17
    $region16: #{tpu_custom_call.1} parent=1 // pred_region
      _
    $region17: #{tpu_custom_call.1} parent=1 // pred_fallthru
      _
    // Predicated region
    $region18: #{tpu_custom_call.1} parent=1 // pred_check
      _
    $region19: #{tpu_custom_call.1} parent=1 // pred_check_branch
      %25 = sbr.rel (0) target = $region21
    $region20: #{tpu_custom_call.1} parent=1 // pred_region
      _
    $region21: #{tpu_custom_call.1} parent=1 // pred_fallthru
      _
    // Predicated region
    $region22: #{tpu_custom_call.1} parent=1 // pred_check
      _
    $region23: #{tpu_custom_call.1} parent=1 // pred_check_branch
      %27 = sbr.rel (0) target = $region25
    $region24: #{tpu_custom_call.1} parent=1 // pred_region
      _
    $region25: #{tpu_custom_call.1} parent=1 // pred_fallthru
      _
    // Predicated region
    $region26: #{tpu_custom_call.1} parent=1 // pred_check
      _
    $region27: #{tpu_custom_call.1} parent=1 // pred_check_branch
      %29 = sbr.rel (0) target = $region29
    $region28: #{tpu_custom_call.1} parent=1 // pred_region
      _
    $region29: #{tpu_custom_call.1} parent=1 // pred_fallthru
      _
    // Predicated region
    $region30: #{tpu_custom_call.1} parent=1 // pred_check
      _
    $region31: #{tpu_custom_call.1} parent=1 // pred_check_branch
      %31 = sbr.rel (0) target = $region33
    $region32: #{tpu_custom_call.1} parent=1 // pred_region
      _
    $region33: #{tpu_custom_call.1} parent=1 // pred_fallthru
      _
    // Predicated region
    $region34: #{tpu_custom_call.1} parent=1 // pred_check
      _
    $region35: #{tpu_custom_call.1} parent=1 // pred_check_branch
      %33 = sbr.rel (0) target = $region37
    $region36: #{tpu_custom_call.1} parent=1 // pred_region
      %s35 = ssub.s32 8704, 8704
      %36 = vsyncadd [#allocation4], %s35
      %s37 = sshll.u32 [#allocation3], 4
      %s38 = int_to_ptr.vmem [resolvable:$true] %s37
      %43 = dma.hbm_to_vmem [thread:$0]  %s8, 8704, %s38, [#allocation4], 64, 64, 4
    $region37: #{tpu_custom_call.1} parent=1 // pred_fallthru
      _
    // Predicated region
    $region38: #{tpu_custom_call.1} parent=1 // pred_check
      _
    $region39: #{tpu_custom_call.1} parent=1 // pred_check_branch
      %45 = sbr.rel (0) target = $region41
    $region40: #{tpu_custom_call.1} parent=1 // pred_region
      %46 = dma.done [#allocation4], 8704
    $region41: #{tpu_custom_call.1} parent=1 // pred_fallthru
      _
    %v48 = vld [vmem:[%s0] sm:$0xff]
    %v49 = vld [vmem:[%s0 + $0x8] sm:$0xff]
    %v50 = vxor.u32 %v48, 2147483648
    %v51 = vxor.u32 %v49, 2147483648
    %v52 = vmul.f32 %v50, 1.442695
    %v53 = vpow.pop %v52
    %v54 = vmul.f32 %v51, 1.442695
    %v55 = vpow.pop %v54
    %v56 = vadd.f32 %v53, 1.0
    %v57 = vadd.f32 %v55, 1.0
    %v58 = vrcp.pop %v56
    %v59 = vmul.f32 1.0, %v58
    %v60 = vrcp.pop %v57
    %v61 = vmul.f32 1.0, %v60
    %v62 = vmul.f32 %v48, %v59
    %v63 = vmul.f32 %v49, %v61
    %v64 = vpack.c.bf16 %v63, %v62
    %vm65 = vcmask 261120
    %66 = vst.msk [vmem:[#allocation2] sm:$0xff] %vm65, %v64
    %v67 = vsel %vm65, %v48, 0.0
    %68 = vadd.xlane.f32.xlu0 %v67
    %v69 = vpop.xlane.xlu0 %68
    %v70 = vsel %vm65, %v49, 0.0
    %71 = vadd.xlane.f32.xlu0 %v70
    %v72 = vpop.xlane.xlu0 %71
    %v73 = vrcp.pop 32.0
    %v74 = vmul.f32 %v69, %v73
    %v75 = vmul.f32 %v72, %v73
    %v76 = vsub.f32 %v48, %v74
    %v77 = vsub.f32 %v49, %v75
    %v78 = vmul.f32 %v76, %v76
    %v79 = vmul.f32 %v77, %v77
    %v80 = vsel %vm65, %v78, 0.0
    %81 = vadd.xlane.f32.xlu0 %v80
    %v82 = vpop.xlane.xlu0 %81
    %v83 = vsel %vm65, %v79, 0.0
    %84 = vadd.xlane.f32.xlu0 %v83
    %v85 = vpop.xlane.xlu0 %84
    %v86 = vmul.f32 %v82, %v73
    %v87 = vmul.f32 %v85, %v73
    %v88 = vadd.f32 %v86, 1e-05
    %v89 = vadd.f32 %v87, 1e-05
    %v90 = vrsqrt.pop %v88
    %v91 = vrsqrt.pop %v89
    %v92 = vmul.f32 %v76, %v90
    %v93 = vmul.f32 %v77, %v91
    %v94 = vld [vmem:[%s1] sm:$0x1]
    %v96 = vlaneseq
    %v97 = vshrl.u32 %v96, 7
    %v98 = vsub.s32 0, %v97
    %v99 = vrot.slane %v94, %v98
    %v101 = vmul.f32 %v92, %v99
    %v102 = vmul.f32 %v93, %v99
    %v103 = vld [vmem:[%s2] sm:$0x1]
    %v105 = vlaneseq
    %v106 = vshrl.u32 %v105, 7
    %v107 = vsub.s32 0, %v106
    %v108 = vrot.slane %v103, %v107
    %v110 = vadd.f32 %v101, %v108
    %v111 = vadd.f32 %v102, %v108
    %v112 = vmul.f32 %v110, 5.0
    %v113 = vmul.f32 %v111, 5.0
    %v114 = vsub.f32 %v112, -5.0
    %v115 = vsub.f32 %v113, -5.0
    %v116 = vmul.f32 %v114, %v114
    %v117 = vmul.f32 %v115, %v115
    %v118 = vadd.f32 %v116, 1.0
    %v119 = vadd.f32 %v117, 1.0
    %v120 = vrcp.pop %v118
    %v121 = vrcp.pop %v119
    %v122 = vpack.c.bf16 %v121, %v120
    %124 = vrot.lane.b32.xlu0 %v122, 32
    %v125 = vpop.permute.xlu0 %124
    %vm127 = vcmask 523520
    %128 = vst.msk [vmem:[#allocation2] sm:$0xff] %vm127, %v125
    %v129 = vsub.f32 %v112, -4.0
    %v130 = vsub.f32 %v113, -4.0
    %v131 = vmul.f32 %v129, %v129
    %v132 = vmul.f32 %v130, %v130
    %v133 = vadd.f32 %v131, 1.0
    %v134 = vadd.f32 %v132, 1.0
    %v135 = vrcp.pop %v133
    %v136 = vrcp.pop %v134
    %v137 = vpack.c.bf16 %v136, %v135
    %139 = vrot.lane.b32.xlu0 %v137, 64
    %v140 = vpop.permute.xlu0 %139
    %vm142 = vcmask 785920
    %143 = vst.msk [vmem:[#allocation2] sm:$0xff] %vm142, %v140
    %v144 = vsub.f32 %v112, -3.0
    %v145 = vsub.f32 %v113, -3.0
    %v146 = vmul.f32 %v144, %v144
    %v147 = vmul.f32 %v145, %v145
    %v148 = vadd.f32 %v146, 1.0
    %v149 = vadd.f32 %v147, 1.0
    %v150 = vrcp.pop %v148
    %v151 = vrcp.pop %v149
    %v152 = vpack.c.bf16 %v151, %v150
    %154 = vrot.lane.b32.xlu0 %v152, 96
    %v155 = vpop.permute.xlu0 %154
    %vm157 = vcmask 1048320
    %158 = vst.msk [vmem:[#allocation2] sm:$0xff] %vm157, %v155
    %v159 = vsub.f32 %v112, -2.0
    %v160 = vsub.f32 %v113, -2.0
    %v161 = vmul.f32 %v159, %v159
    %v162 = vmul.f32 %v160, %v160
    %v163 = vadd.f32 %v161, 1.0
    %v164 = vadd.f32 %v162, 1.0
    %v165 = vrcp.pop %v163
    %v166 = vrcp.pop %v164
    %v167 = vpack.c.bf16 %v166, %v165
    %168 = vst.msk [vmem:[#allocation2 + $0x8] sm:$0xff] %vm65, %v167
    %v169 = vsub.f32 %v112, -1.0
    %v170 = vsub.f32 %v113, -1.0
    %v171 = vmul.f32 %v169, %v169
    %v172 = vmul.f32 %v170, %v170
    %v173 = vadd.f32 %v171, 1.0
    %v174 = vadd.f32 %v172, 1.0
    %v175 = vrcp.pop %v173
    %v176 = vrcp.pop %v174
    %v177 = vpack.c.bf16 %v176, %v175
    %179 = vrot.lane.b32.xlu0 %v177, 32
    %v180 = vpop.permute.xlu0 %179
    %182 = vst.msk [vmem:[#allocation2 + $0x8] sm:$0xff] %vm127, %v180
    %v183 = vmul.f32 %v112, %v112
    %v184 = vmul.f32 %v113, %v113
    %v185 = vadd.f32 %v183, 1.0
    %v186 = vadd.f32 %v184, 1.0
    %v187 = vrcp.pop %v185
    %v188 = vrcp.pop %v186
    %v189 = vpack.c.bf16 %v188, %v187
    %191 = vrot.lane.b32.xlu0 %v189, 64
    %v192 = vpop.permute.xlu0 %191
    %194 = vst.msk [vmem:[#allocation2 + $0x8] sm:$0xff] %vm142, %v192
    %v195 = vsub.f32 %v112, 1.0
    %v196 = vsub.f32 %v113, 1.0
    %v197 = vmul.f32 %v195, %v195
    %v198 = vmul.f32 %v196, %v196
    %v199 = vadd.f32 %v197, 1.0
    %v200 = vadd.f32 %v198, 1.0
    %v201 = vrcp.pop %v199
    %v202 = vrcp.pop %v200
    %v203 = vpack.c.bf16 %v202, %v201
    %205 = vrot.lane.b32.xlu0 %v203, 96
    %v206 = vpop.permute.xlu0 %205
    %208 = vst.msk [vmem:[#allocation2 + $0x8] sm:$0xff] %vm157, %v206
    %v209 = vsub.f32 %v112, 2.0
    %v210 = vsub.f32 %v113, 2.0
    %v211 = vmul.f32 %v209, %v209
    %v212 = vmul.f32 %v210, %v210
    %v213 = vadd.f32 %v211, 1.0
    %v214 = vadd.f32 %v212, 1.0
    %v215 = vrcp.pop %v213
    %v216 = vrcp.pop %v214
    %v217 = vpack.c.bf16 %v216, %v215
    %218 = vst.msk [vmem:[#allocation2 + $0x10] sm:$0xff] %vm65, %v217
    %v219 = vsub.f32 %v112, 3.0
    %v220 = vsub.f32 %v113, 3.0
    %v221 = vmul.f32 %v219, %v219
    %v222 = vmul.f32 %v220, %v220
    %v223 = vadd.f32 %v221, 1.0
    %v224 = vadd.f32 %v222, 1.0
    %v225 = vrcp.pop %v223
    %v226 = vrcp.pop %v224
    %v227 = vpack.c.bf16 %v226, %v225
    %229 = vrot.lane.b32.xlu0 %v227, 32
    %v230 = vpop.permute.xlu0 %229
    %232 = vst.msk [vmem:[#allocation2 + $0x10] sm:$0xff] %vm127, %v230
    %v233 = vsub.f32 %v112, 4.0
    %v234 = vsub.f32 %v113, 4.0
    %v235 = vmul.f32 %v233, %v233
    %v236 = vmul.f32 %v234, %v234
    %v237 = vadd.f32 %v235, 1.0
    %v238 = vadd.f32 %v236, 1.0
    %v239 = vrcp.pop %v237
    %v240 = vrcp.pop %v238
    %v241 = vpack.c.bf16 %v240, %v239
    %243 = vrot.lane.b32.xlu0 %v241, 64
    %v244 = vpop.permute.xlu0 %243
    %246 = vst.msk [vmem:[#allocation2 + $0x10] sm:$0xff] %vm142, %v244
    %v247 = vsub.f32 %v112, 5.0
    %v248 = vsub.f32 %v113, 5.0
    %v249 = vmul.f32 %v247, %v247
    %v250 = vmul.f32 %v248, %v248
    %v251 = vadd.f32 %v249, 1.0
    %v252 = vadd.f32 %v250, 1.0
    %v253 = vrcp.pop %v251
    %v254 = vrcp.pop %v252
    %v255 = vpack.c.bf16 %v254, %v253
    %257 = vrot.lane.b32.xlu0 %v255, 96
    %v258 = vpop.permute.xlu0 %257
    %260 = vst.msk [vmem:[#allocation2 + $0x10] sm:$0xff] %vm157, %v258
    %v261 = vsub.f32 %v112, 6.0
    %v262 = vsub.f32 %v113, 6.0
    %v263 = vmul.f32 %v261, %v261
    %v264 = vmul.f32 %v262, %v262
    %v265 = vadd.f32 %v263, 1.0
    %v266 = vadd.f32 %v264, 1.0
    %v267 = vrcp.pop %v265
    %v268 = vrcp.pop %v266
    %v269 = vpack.c.bf16 %v268, %v267
    %270 = vst.msk [vmem:[#allocation2 + $0x18] sm:$0xff] %vm65, %v269
    %v271 = vsub.f32 %v112, 7.0
    %v272 = vsub.f32 %v113, 7.0
    %v273 = vmul.f32 %v271, %v271
    %v274 = vmul.f32 %v272, %v272
    %v275 = vadd.f32 %v273, 1.0
    %v276 = vadd.f32 %v274, 1.0
    %v277 = vrcp.pop %v275
    %v278 = vrcp.pop %v276
    %v279 = vpack.c.bf16 %v278, %v277
    %281 = vrot.lane.b32.xlu0 %v279, 32
    %v282 = vpop.permute.xlu0 %281
    %284 = vst.msk [vmem:[#allocation2 + $0x18] sm:$0xff] %vm127, %v282
    %v285 = vsub.f32 %v112, 8.0
    %v286 = vsub.f32 %v113, 8.0
    %v287 = vmul.f32 %v285, %v285
    %v288 = vmul.f32 %v286, %v286
    %v289 = vadd.f32 %v287, 1.0
    %v290 = vadd.f32 %v288, 1.0
    %v291 = vrcp.pop %v289
    %v292 = vrcp.pop %v290
    %v293 = vpack.c.bf16 %v292, %v291
    %295 = vrot.lane.b32.xlu0 %v293, 64
    %v296 = vpop.permute.xlu0 %295
    %298 = vst.msk [vmem:[#allocation2 + $0x18] sm:$0xff] %vm142, %v296
    %v299 = vsub.f32 %v112, 9.0
    %v300 = vsub.f32 %v113, 9.0
    %v301 = vmul.f32 %v299, %v299
    %v302 = vmul.f32 %v300, %v300
    %v303 = vadd.f32 %v301, 1.0
    %v304 = vadd.f32 %v302, 1.0
    %v305 = vrcp.pop %v303
    %v306 = vrcp.pop %v304
    %v307 = vpack.c.bf16 %v306, %v305
    %309 = vrot.lane.b32.xlu0 %v307, 96
    %v310 = vpop.permute.xlu0 %309
    %312 = vst.msk [vmem:[#allocation2 + $0x18] sm:$0xff] %vm157, %v310
    %v313 = vsub.f32 %v112, 10.0
    %v314 = vsub.f32 %v113, 10.0
    %v315 = vmul.f32 %v313, %v313
    %v316 = vmul.f32 %v314, %v314
    %v317 = vadd.f32 %v315, 1.0
    %v318 = vadd.f32 %v316, 1.0
    %v319 = vrcp.pop %v317
    %v320 = vrcp.pop %v318
    %v321 = vpack.c.bf16 %v320, %v319
    %322 = vst.msk [vmem:[#allocation2 + $0x20] sm:$0xff] %vm65, %v321
    %v323 = vld [vmem:[#allocation2] sm:$0xff]
    %v324 = vld [vmem:[#allocation2 + $0x8] sm:$0xff]
    %v325 = vld [vmem:[#allocation2 + $0x10] sm:$0xff]
    %v326 = vld [vmem:[#allocation2 + $0x18] sm:$0xff]
    %v327 = vld [vmem:[#allocation2 + $0x20] sm:$0xff]
    %v328 = vld [vmem:[%s4] sm:$0xf]
    %v329 = vld [vmem:[%s4 + $0x4] sm:$0xf]
    %v330 = vld [vmem:[%s4 + $0x8] sm:$0xf]
    %v331 = vld [vmem:[%s4 + $0xc] sm:$0xf]
    %v332 = vld [vmem:[%s4 + $0x10] sm:$0xf]
    %v333 = vld [vmem:[%s4 + $0x14] sm:$0xf]
    %v334 = vld [vmem:[%s4 + $0x18] sm:$0xf]
    %v335 = vld [vmem:[%s4 + $0x1c] sm:$0xf]
    %v336 = vld [vmem:[%s4 + $0x20] sm:$0xf]
    %v337 = vld [vmem:[%s4 + $0x24] sm:$0xf]
    %v338 = vld [vmem:[%s4 + $0x28] sm:$0xf]
    %v339 = vld [vmem:[%s4 + $0x2c] sm:$0xf]
    %v340 = vld [vmem:[%s4 + $0x30] sm:$0xf]
    %v341 = vld [vmem:[%s4 + $0x34] sm:$0xf]
    %v342 = vld [vmem:[%s4 + $0x38] sm:$0xf]
    %v343 = vld [vmem:[%s4 + $0x3c] sm:$0xf]
    %v344 = vld [vmem:[%s4 + $0x40] sm:$0xf]
    %v345 = vld [vmem:[%s4 + $0x44] sm:$0xf]
    %v346 = vld [vmem:[%s4 + $0x48] sm:$0xf]
    %v347 = vld [vmem:[%s4 + $0x4c] sm:$0xf]
    %v348 = vld [vmem:[%s4 + $0x50] sm:$0xf]
    %v349 = vld [vmem:[%s4 + $0x54] sm:$0xf]
    %v350 = vld [vmem:[%s4 + $0x58] sm:$0xf]
    %v351 = vld [vmem:[%s4 + $0x5c] sm:$0xf]
    %v352 = vld [vmem:[%s4 + $0x60] sm:$0xf]
    %v353 = vld [vmem:[%s4 + $0x64] sm:$0xf]
    %v354 = vld [vmem:[%s4 + $0x68] sm:$0xf]
    %v355 = vld [vmem:[%s4 + $0x6c] sm:$0xf]
    %v356 = vld [vmem:[%s4 + $0x70] sm:$0xf]
    %v357 = vld [vmem:[%s4 + $0x74] sm:$0xf]
    %v358 = vld [vmem:[%s4 + $0x78] sm:$0xf]
    %v359 = vld [vmem:[%s4 + $0x7c] sm:$0xf]
    %v360 = vld [vmem:[%s4 + $0x80] sm:$0xf]
    %v361 = vld [vmem:[%s4 + $0x84] sm:$0xf]
    %v362 = vld [vmem:[%s4 + $0x88] sm:$0xf]
    %v363 = vld [vmem:[%s4 + $0x8c] sm:$0xf]
    %v364 = vld [vmem:[%s4 + $0x90] sm:$0xf]
    %v365 = vld [vmem:[%s4 + $0x94] sm:$0xf]
    %v366 = vld [vmem:[%s4 + $0x98] sm:$0xf]
    %v367 = vld [vmem:[%s4 + $0x9c] sm:$0xf]
    %v368 = vld [vmem:[%s4 + $0xa0] sm:$0xf]
    %v369 = vld [vmem:[%s4 + $0xa4] sm:$0xf]
    %v370 = vld [vmem:[%s4 + $0xa8] sm:$0xf]
    %v371 = vld [vmem:[%s4 + $0xac] sm:$0xf]
    %v372 = vld [vmem:[%s4 + $0xb0] sm:$0xf]
    %v373 = vld [vmem:[%s4 + $0xb4] sm:$0xf]
    %v374 = vld [vmem:[%s4 + $0xb8] sm:$0xf]
    %v375 = vld [vmem:[%s4 + $0xbc] sm:$0xf]
    %v376 = vld [vmem:[%s4 + $0xc0] sm:$0xf]
    %v377 = vld [vmem:[%s4 + $0xc4] sm:$0xf]
    %v378 = vld [vmem:[%s4 + $0xc8] sm:$0xf]
    %v379 = vld [vmem:[%s4 + $0xcc] sm:$0xf]
    %v380 = vld [vmem:[%s4 + $0xd0] sm:$0xf]
    %v381 = vld [vmem:[%s4 + $0xd4] sm:$0xf]
    %v382 = vld [vmem:[%s4 + $0xd8] sm:$0xf]
    %v383 = vld [vmem:[%s4 + $0xdc] sm:$0xf]
    %v384 = vld [vmem:[%s4 + $0xe0] sm:$0xf]
    %v385 = vld [vmem:[%s4 + $0xe4] sm:$0xf]
    %v386 = vld [vmem:[%s4 + $0xe8] sm:$0xf]
    %v387 = vld [vmem:[%s4 + $0xec] sm:$0xf]
    %v388 = vld [vmem:[%s4 + $0xf0] sm:$0xf]
    %v389 = vld [vmem:[%s4 + $0xf4] sm:$0xf]
    %v390 = vld [vmem:[%s4 + $0xf8] sm:$0xf]
    %v391 = vld [vmem:[%s4 + $0xfc] sm:$0xf]
    %v392 = vld [vmem:[%s4 + $0x100] sm:$0xf]
    %v393 = vld [vmem:[%s4 + $0x104] sm:$0xf]
    %v394 = vld [vmem:[%s4 + $0x108] sm:$0xf]
    %v395 = vld [vmem:[%s4 + $0x10c] sm:$0xf]
    %v396 = vld [vmem:[%s3] sm:$0x1]
    %v398 = vlaneseq
    %v399 = vshrl.u32 %v398, 7
    %v400 = vsub.s32 0, %v399
    %v401 = vrot.slane %v396, %v400
    %v471 = vunpack.c.l.b16 %v328
    %v472 = vunpack.c.l.b16 %v329
    %v473 = vunpack.c.l.b16 %v330
    %v474 = vunpack.c.l.b16 %v331
    %v475 = vunpack.c.l.b16 %v332
    %v476 = vunpack.c.l.b16 %v333
    %v477 = vunpack.c.l.b16 %v334
    %v478 = vunpack.c.l.b16 %v335
    %v479 = vunpack.c.l.b16 %v336
    %v480 = vunpack.c.l.b16 %v337
    %v481 = vunpack.c.l.b16 %v338
    %v482 = vunpack.c.l.b16 %v339
    %v483 = vunpack.c.l.b16 %v340
    %v484 = vunpack.c.l.b16 %v341
    %v485 = vunpack.c.l.b16 %v342
    %v486 = vunpack.c.l.b16 %v343
    %v487 = vunpack.c.l.b16 %v344
    %v488 = vunpack.c.l.b16 %v345
    %v489 = vunpack.c.l.b16 %v346
    %v490 = vunpack.c.l.b16 %v347
    %v491 = vunpack.c.l.b16 %v348
    %v492 = vunpack.c.l.b16 %v349
    %v493 = vunpack.c.l.b16 %v350
    %v494 = vunpack.c.l.b16 %v351
    %v495 = vunpack.c.l.b16 %v352
    %v496 = vunpack.c.l.b16 %v353
    %v497 = vunpack.c.l.b16 %v354
    %v498 = vunpack.c.l.b16 %v355
    %v499 = vunpack.c.l.b16 %v356
    %v500 = vunpack.c.l.b16 %v357
    %v501 = vunpack.c.l.b16 %v358
    %v502 = vunpack.c.l.b16 %v359
    %v503 = vunpack.c.l.b16 %v360
    %v504 = vunpack.c.l.b16 %v361
    %v505 = vunpack.c.l.b16 %v362
    %v506 = vunpack.c.l.b16 %v363
    %v507 = vunpack.c.l.b16 %v364
    %v508 = vunpack.c.l.b16 %v365
    %v509 = vunpack.c.l.b16 %v366
    %v510 = vunpack.c.l.b16 %v367
    %v511 = vunpack.c.l.b16 %v368
    %v512 = vunpack.c.l.b16 %v369
    %v513 = vunpack.c.l.b16 %v370
    %v514 = vunpack.c.l.b16 %v371
    %v515 = vunpack.c.l.b16 %v372
    %v516 = vunpack.c.l.b16 %v373
    %v517 = vunpack.c.l.b16 %v374
    %v518 = vunpack.c.l.b16 %v375
    %v519 = vunpack.c.l.b16 %v376
    %v520 = vunpack.c.l.b16 %v377
    %v521 = vunpack.c.l.b16 %v378
    %v522 = vunpack.c.l.b16 %v379
    %v523 = vunpack.c.l.b16 %v380
    %v524 = vunpack.c.l.b16 %v381
    %v525 = vunpack.c.l.b16 %v382
    %v526 = vunpack.c.l.b16 %v383
    %v527 = vunpack.c.l.b16 %v384
    %v528 = vunpack.c.l.b16 %v385
    %v529 = vunpack.c.l.b16 %v386
    %v530 = vunpack.c.l.b16 %v387
    %v531 = vunpack.c.l.b16 %v388
    %v532 = vunpack.c.l.b16 %v389
    %v533 = vunpack.c.l.b16 %v390
    %v534 = vunpack.c.l.b16 %v391
    %v535 = vunpack.c.l.b16 %v392
    %v536 = vunpack.c.l.b16 %v393
    %v537 = vunpack.c.l.b16 %v394
    %v538 = vunpack.c.l.b16 %v395
    %v539 = vpack.c.b16 %v472, %v471
    %v540 = vpack.c.b16 %v474, %v473
    %v541 = vpack.c.b16 %v476, %v475
    %v542 = vpack.c.b16 %v478, %v477
    %v543 = vpack.c.b16 %v480, %v479
    %v544 = vpack.c.b16 %v482, %v481
    %v545 = vpack.c.b16 %v484, %v483
    %v546 = vpack.c.b16 %v486, %v485
    %v547 = vpack.c.b16 %v488, %v487
    %v548 = vpack.c.b16 %v490, %v489
    %v549 = vpack.c.b16 %v492, %v491
    %v550 = vpack.c.b16 %v494, %v493
    %v551 = vpack.c.b16 %v496, %v495
    %v552 = vpack.c.b16 %v498, %v497
    %v553 = vpack.c.b16 %v500, %v499
    %v554 = vpack.c.b16 %v502, %v501
    %v555 = vpack.c.b16 %v504, %v503
    %v556 = vpack.c.b16 %v506, %v505
    %v557 = vpack.c.b16 %v508, %v507
    %v558 = vpack.c.b16 %v510, %v509
    %v559 = vpack.c.b16 %v512, %v511
    %v560 = vpack.c.b16 %v514, %v513
    %v561 = vpack.c.b16 %v516, %v515
    %v562 = vpack.c.b16 %v518, %v517
    %v563 = vpack.c.b16 %v520, %v519
    %v564 = vpack.c.b16 %v522, %v521
    %v565 = vpack.c.b16 %v524, %v523
    %v566 = vpack.c.b16 %v526, %v525
    %v567 = vpack.c.b16 %v528, %v527
    %v568 = vpack.c.b16 %v530, %v529
    %v569 = vpack.c.b16 %v532, %v531
    %v570 = vpack.c.b16 %v534, %v533
    %v571 = vpack.c.b16 %v536, %v535
    %v572 = vpack.c.b16 %v538, %v537
    %v608 = vsel %vm65, %v327, 0
    %610 = vmatprep.subr.bf16.mxu0 0
    %611 = vmatpush1.bf16.msra.mxu0 %v539
    %612 = vmatprep.subr.bf16.mxu0 0
    %613 = vmatpush1.bf16.msra.mxu0 %v540
    %614 = vmatprep.subr.bf16.mxu0 0
    %615 = vmatpush1.bf16.msra.mxu0 %v541
    %616 = vmatprep.subr.bf16.mxu0 0
    %617 = vmatpush1.bf16.msra.mxu0 %v542
    %618 = vmatprep.subr.bf16.mxu0 0
    %619 = vmatpush1.bf16.msra.mxu0 %v543
    %620 = vmatprep.subr.bf16.mxu0 0
    %621 = vmatpush1.bf16.msra.mxu0 %v544
    %622 = vmatprep.subr.bf16.mxu0 0
    %623 = vmatpush1.bf16.msra.mxu0 %v545
    %624 = vmatprep.subr.bf16.mxu0 0
    %625 = vmatpush1.bf16.msra.mxu0 %v546
    %626 = vmatprep.subr.bf16.mxu0 0
    %627 = vmatpush1.bf16.msra.mxu0 %v547
    %628 = vmatprep.subr.bf16.mxu0 0
    %629 = vmatpush1.bf16.msra.mxu0 %v548
    %630 = vmatprep.subr.bf16.mxu0 0
    %631 = vmatpush1.bf16.msra.mxu0 %v549
    %632 = vmatprep.subr.bf16.mxu0 0
    %633 = vmatpush1.bf16.msra.mxu0 %v550
    %634 = vmatprep.subr.bf16.mxu0 0
    %635 = vmatpush1.bf16.msra.mxu0 %v551
    %636 = vmatprep.subr.bf16.mxu0 0
    %637 = vmatpush1.bf16.msra.mxu0 %v552
    %638 = vmatprep.subr.bf16.mxu0 0
    %639 = vmatpush1.bf16.msra.mxu0 %v553
    %640 = vmatprep.subr.bf16.mxu0 0
    %641 = vmatpush1.bf16.msra.mxu0 %v554
    %642 = vmatprep.mubr.bf16.mxu0 %v324
    %643 = vmatmul.mubr.bf16.gmra.mrb[0].mxu0 %v323
    %v644 = vpop.f32.mrb[0].mxu0
    %v645 = vadd.f32 %v401, %v644
    %v646 = vpop.f32.mrb[0].mxu0
    %v647 = vpop.f32.mrb[0].mxu0
    %v648 = vadd.f32 %v401, %v647
    %v649 = vpop.f32.mrb[0].mxu0
    %650 = vdwg.mxu0
    %651 = vmatprep.subr.bf16.mxu0 0
    %652 = vmatpush1.bf16.msra.mxu0 %v555
    %653 = vmatprep.subr.bf16.mxu0 0
    %654 = vmatpush1.bf16.msra.mxu0 %v556
    %655 = vmatprep.subr.bf16.mxu0 0
    %656 = vmatpush1.bf16.msra.mxu0 %v557
    %657 = vmatprep.subr.bf16.mxu0 0
    %658 = vmatpush1.bf16.msra.mxu0 %v558
    %659 = vmatprep.subr.bf16.mxu0 0
    %660 = vmatpush1.bf16.msra.mxu0 %v559
    %661 = vmatprep.subr.bf16.mxu0 0
    %662 = vmatpush1.bf16.msra.mxu0 %v560
    %663 = vmatprep.subr.bf16.mxu0 0
    %664 = vmatpush1.bf16.msra.mxu0 %v561
    %665 = vmatprep.subr.bf16.mxu0 0
    %666 = vmatpush1.bf16.msra.mxu0 %v562
    %667 = vmatprep.subr.bf16.mxu0 0
    %668 = vmatpush1.bf16.msra.mxu0 %v563
    %669 = vmatprep.subr.bf16.mxu0 0
    %670 = vmatpush1.bf16.msra.mxu0 %v564
    %671 = vmatprep.subr.bf16.mxu0 0
    %672 = vmatpush1.bf16.msra.mxu0 %v565
    %673 = vmatprep.subr.bf16.mxu0 0
    %674 = vmatpush1.bf16.msra.mxu0 %v566
    %675 = vmatprep.subr.bf16.mxu0 0
    %676 = vmatpush1.bf16.msra.mxu0 %v567
    %677 = vmatprep.subr.bf16.mxu0 0
    %678 = vmatpush1.bf16.msra.mxu0 %v568
    %679 = vmatprep.subr.bf16.mxu0 0
    %680 = vmatpush1.bf16.msra.mxu0 %v569
    %681 = vmatprep.subr.bf16.mxu0 0
    %682 = vmatpush1.bf16.msra.mxu0 %v570
    %683 = vmatprep.mubr.bf16.mxu0 %v326
    %684 = vmatmul.mubr.bf16.gmra.mrb[0].mxu0 %v325
    %v685 = vpop.f32.mrb[0].mxu0
    %v686 = vadd.f32 %v645, %v685
    %v687 = vpop.f32.mrb[0].mxu0
    %v688 = vpop.f32.mrb[0].mxu0
    %v689 = vadd.f32 %v648, %v688
    %v690 = vpop.f32.mrb[0].mxu0
    %691 = vdwg.mxu0
    %692 = vmatprep.subr.bf16.mxu0 0
    %693 = vmatpush1.bf16.msra.mxu0 %v571
    %694 = vmatprep.subr.bf16.mxu0 0
    %695 = vmatpush1.bf16.msra.mxu0 %v572
    %696 = vmatprep.subr.bf16.mxu0 0
    %697 = vmatpush1.bf16.msra.mxu0 0
    %698 = vmatprep.subr.bf16.mxu0 0
    %699 = vmatpush1.bf16.msra.mxu0 0
    %700 = vmatprep.subr.bf16.mxu0 0
    %701 = vmatpush1.bf16.msra.mxu0 0
    %702 = vmatprep.subr.bf16.mxu0 0
    %703 = vmatpush1.bf16.msra.mxu0 0
    %704 = vmatprep.subr.bf16.mxu0 0
    %705 = vmatpush1.bf16.msra.mxu0 0
    %706 = vmatprep.subr.bf16.mxu0 0
    %707 = vmatpush1.bf16.msra.mxu0 0
    %708 = vmatprep.subr.bf16.mxu0 0
    %709 = vmatpush1.bf16.msra.mxu0 0
    %710 = vmatprep.subr.bf16.mxu0 0
    %711 = vmatpush1.bf16.msra.mxu0 0
    %712 = vmatprep.subr.bf16.mxu0 0
    %713 = vmatpush1.bf16.msra.mxu0 0
    %714 = vmatprep.subr.bf16.mxu0 0
    %715 = vmatpush1.bf16.msra.mxu0 0
    %716 = vmatprep.subr.bf16.mxu0 0
    %717 = vmatpush1.bf16.msra.mxu0 0
    %718 = vmatprep.subr.bf16.mxu0 0
    %719 = vmatpush1.bf16.msra.mxu0 0
    %720 = vmatprep.subr.bf16.mxu0 0
    %721 = vmatpush1.bf16.msra.mxu0 0
    %722 = vmatprep.subr.bf16.mxu0 0
    %723 = vmatpush1.bf16.msra.mxu0 0
    %724 = vmatprep.mubr.bf16.mxu0 0
    %725 = vmatmul.mubr.bf16.gmra.mrb[0].mxu0 %v608
    %v726 = vpop.f32.mrb[0].mxu0
    %v727 = vadd.f32 %v686, %v726
    %v728 = vpop.f32.mrb[0].mxu0
    %v729 = vpop.f32.mrb[0].mxu0
    %v730 = vadd.f32 %v689, %v729
    %v731 = vpop.f32.mrb[0].mxu0
    %732 = vdwg.mxu0
    %v733 = vxor.u32 %v727, 2147483648
    %v734 = vxor.u32 %v730, 2147483648
    %v735 = vmul.f32 %v733, 1.442695
    %v736 = vpow.pop %v735
    %v737 = vmul.f32 %v734, 1.442695
    %v738 = vpow.pop %v737
    %v739 = vadd.f32 %v736, 1.0
    %v740 = vadd.f32 %v738, 1.0
    %v741 = vrcp.pop %v739
    %v742 = vmul.f32 1.0, %v741
    %v743 = vrcp.pop %v740
    %v744 = vmul.f32 1.0, %v743
    %v745 = vmul.f32 %v727, %v742
    %v746 = vmul.f32 %v730, %v744
    %v747 = vpack.c.bf16 %v746, %v745
    %vm748 = vcmask 523264
    %749 = vst.msk [vmem:[#allocation2] sm:$0xff] %vm748, %v747
    %v750 = vsel %vm748, %v727, 0.0
    %751 = vadd.xlane.f32.xlu0 %v750
    %v752 = vpop.xlane.xlu0 %751
    %v753 = vsel %vm748, %v730, 0.0
    %754 = vadd.xlane.f32.xlu0 %v753
    %v755 = vpop.xlane.xlu0 %754
    %v756 = vrcp.pop 64.0
    %v757 = vmul.f32 %v752, %v756
    %v758 = vmul.f32 %v755, %v756
    %v759 = vsub.f32 %v727, %v757
    %v760 = vsub.f32 %v730, %v758
    %v761 = vmul.f32 %v759, %v759
    %v762 = vmul.f32 %v760, %v760
    %v763 = vsel %vm748, %v761, 0.0
    %764 = vadd.xlane.f32.xlu0 %v763
    %v765 = vpop.xlane.xlu0 %764
    %v766 = vsel %vm748, %v762, 0.0
    %767 = vadd.xlane.f32.xlu0 %v766
    %v768 = vpop.xlane.xlu0 %767
    %v769 = vmul.f32 %v765, %v756
    %v770 = vmul.f32 %v768, %v756
    %v771 = vadd.f32 %v769, 1e-05
    %v772 = vadd.f32 %v770, 1e-05
    %v773 = vrsqrt.pop %v771
    %v774 = vrsqrt.pop %v772
    %v775 = vmul.f32 %v759, %v773
    %v776 = vmul.f32 %v760, %v774
    %v777 = vld [vmem:[%s5] sm:$0x1]
    %v779 = vlaneseq
    %v780 = vshrl.u32 %v779, 7
    %v781 = vsub.s32 0, %v780
    %v782 = vrot.slane %v777, %v781
    %v784 = vmul.f32 %v775, %v782
    %v785 = vmul.f32 %v776, %v782
    %v786 = vld [vmem:[%s6] sm:$0x1]
    %v788 = vlaneseq
    %v789 = vshrl.u32 %v788, 7
    %v790 = vsub.s32 0, %v789
    %v791 = vrot.slane %v786, %v790
    %v793 = vadd.f32 %v784, %v791
    %v794 = vadd.f32 %v785, %v791
    %v795 = vmul.f32 %v793, 5.0
    %v796 = vmul.f32 %v794, 5.0
    %v797 = vsub.f32 %v795, -5.0
    %v798 = vsub.f32 %v796, -5.0
    %v799 = vmul.f32 %v797, %v797
    %v800 = vmul.f32 %v798, %v798
    %v801 = vadd.f32 %v799, 1.0
    %v802 = vadd.f32 %v800, 1.0
    %v803 = vrcp.pop %v801
    %v804 = vrcp.pop %v802
    %v805 = vpack.c.bf16 %v804, %v803
    %807 = vrot.lane.b32.xlu0 %v805, 64
    %v808 = vpop.permute.xlu0 %807
    %vm810 = vcmask 1048064
    %811 = vst.msk [vmem:[#allocation2] sm:$0xff] %vm810, %v808
    %v812 = vsub.f32 %v795, -4.0
    %v813 = vsub.f32 %v796, -4.0
    %v814 = vmul.f32 %v812, %v812
    %v815 = vmul.f32 %v813, %v813
    %v816 = vadd.f32 %v814, 1.0
    %v817 = vadd.f32 %v815, 1.0
    %v818 = vrcp.pop %v816
    %v819 = vrcp.pop %v817
    %v820 = vpack.c.bf16 %v819, %v818
    %821 = vst.msk [vmem:[#allocation2 + $0x8] sm:$0xff] %vm748, %v820
    %v822 = vsub.f32 %v795, -3.0
    %v823 = vsub.f32 %v796, -3.0
    %v824 = vmul.f32 %v822, %v822
    %v825 = vmul.f32 %v823, %v823
    %v826 = vadd.f32 %v824, 1.0
    %v827 = vadd.f32 %v825, 1.0
    %v828 = vrcp.pop %v826
    %v829 = vrcp.pop %v827
    %v830 = vpack.c.bf16 %v829, %v828
    %832 = vrot.lane.b32.xlu0 %v830, 64
    %v833 = vpop.permute.xlu0 %832
    %835 = vst.msk [vmem:[#allocation2 + $0x8] sm:$0xff] %vm810, %v833
    %v836 = vsub.f32 %v795, -2.0
    %v837 = vsub.f32 %v796, -2.0
    %v838 = vmul.f32 %v836, %v836
    %v839 = vmul.f32 %v837, %v837
    %v840 = vadd.f32 %v838, 1.0
    %v841 = vadd.f32 %v839, 1.0
    %v842 = vrcp.pop %v840
    %v843 = vrcp.pop %v841
    %v844 = vpack.c.bf16 %v843, %v842
    %845 = vst.msk [vmem:[#allocation2 + $0x10] sm:$0xff] %vm748, %v844
    %v846 = vsub.f32 %v795, -1.0
    %v847 = vsub.f32 %v796, -1.0
    %v848 = vmul.f32 %v846, %v846
    %v849 = vmul.f32 %v847, %v847
    %v850 = vadd.f32 %v848, 1.0
    %v851 = vadd.f32 %v849, 1.0
    %v852 = vrcp.pop %v850
    %v853 = vrcp.pop %v851
    %v854 = vpack.c.bf16 %v853, %v852
    %856 = vrot.lane.b32.xlu0 %v854, 64
    %v857 = vpop.permute.xlu0 %856
    %859 = vst.msk [vmem:[#allocation2 + $0x10] sm:$0xff] %vm810, %v857
    %v860 = vmul.f32 %v795, %v795
    %v861 = vmul.f32 %v796, %v796
    %v862 = vadd.f32 %v860, 1.0
    %v863 = vadd.f32 %v861, 1.0
    %v864 = vrcp.pop %v862
    %v865 = vrcp.pop %v863
    %v866 = vpack.c.bf16 %v865, %v864
    %867 = vst.msk [vmem:[#allocation2 + $0x18] sm:$0xff] %vm748, %v866
    %v868 = vsub.f32 %v795, 1.0
    %v869 = vsub.f32 %v796, 1.0
    %v870 = vmul.f32 %v868, %v868
    %v871 = vmul.f32 %v869, %v869
    %v872 = vadd.f32 %v870, 1.0
    %v873 = vadd.f32 %v871, 1.0
    %v874 = vrcp.pop %v872
    %v875 = vrcp.pop %v873
    %v876 = vpack.c.bf16 %v875, %v874
    %878 = vrot.lane.b32.xlu0 %v876, 64
    %v879 = vpop.permute.xlu0 %878
    %881 = vst.msk [vmem:[#allocation2 + $0x18] sm:$0xff] %vm810, %v879
    %v882 = vsub.f32 %v795, 2.0
    %v883 = vsub.f32 %v796, 2.0
    %v884 = vmul.f32 %v882, %v882
    %v885 = vmul.f32 %v883, %v883
    %v886 = vadd.f32 %v884, 1.0
    %v887 = vadd.f32 %v885, 1.0
    %v888 = vrcp.pop %v886
    %v889 = vrcp.pop %v887
    %v890 = vpack.c.bf16 %v889, %v888
    %891 = vst.msk [vmem:[#allocation2 + $0x20] sm:$0xff] %vm748, %v890
    %v892 = vsub.f32 %v795, 3.0
    %v893 = vsub.f32 %v796, 3.0
    %v894 = vmul.f32 %v892, %v892
    %v895 = vmul.f32 %v893, %v893
    %v896 = vadd.f32 %v894, 1.0
    %v897 = vadd.f32 %v895, 1.0
    %v898 = vrcp.pop %v896
    %v899 = vrcp.pop %v897
    %v900 = vpack.c.bf16 %v899, %v898
    %902 = vrot.lane.b32.xlu0 %v900, 64
    %v903 = vpop.permute.xlu0 %902
    %905 = vst.msk [vmem:[#allocation2 + $0x20] sm:$0xff] %vm810, %v903
    %v906 = vsub.f32 %v795, 4.0
    %v907 = vsub.f32 %v796, 4.0
    %v908 = vmul.f32 %v906, %v906
    %v909 = vmul.f32 %v907, %v907
    %v910 = vadd.f32 %v908, 1.0
    %v911 = vadd.f32 %v909, 1.0
    %v912 = vrcp.pop %v910
    %v913 = vrcp.pop %v911
    %v914 = vpack.c.bf16 %v913, %v912
    %915 = vst.msk [vmem:[#allocation2 + $0x28] sm:$0xff] %vm748, %v914
    %v916 = vsub.f32 %v795, 5.0
    %v917 = vsub.f32 %v796, 5.0
    %v918 = vmul.f32 %v916, %v916
    %v919 = vmul.f32 %v917, %v917
    %v920 = vadd.f32 %v918, 1.0
    %v921 = vadd.f32 %v919, 1.0
    %v922 = vrcp.pop %v920
    %v923 = vrcp.pop %v921
    %v924 = vpack.c.bf16 %v923, %v922
    %926 = vrot.lane.b32.xlu0 %v924, 64
    %v927 = vpop.permute.xlu0 %926
    %929 = vst.msk [vmem:[#allocation2 + $0x28] sm:$0xff] %vm810, %v927
    %v930 = vsub.f32 %v795, 6.0
    %v931 = vsub.f32 %v796, 6.0
    %v932 = vmul.f32 %v930, %v930
    %v933 = vmul.f32 %v931, %v931
    %v934 = vadd.f32 %v932, 1.0
    %v935 = vadd.f32 %v933, 1.0
    %v936 = vrcp.pop %v934
    %v937 = vrcp.pop %v935
    %v938 = vpack.c.bf16 %v937, %v936
    %939 = vst.msk [vmem:[#allocation2 + $0x30] sm:$0xff] %vm748, %v938
    %v940 = vsub.f32 %v795, 7.0
    %v941 = vsub.f32 %v796, 7.0
    %v942 = vmul.f32 %v940, %v940
    %v943 = vmul.f32 %v941, %v941
    %v944 = vadd.f32 %v942, 1.0
    %v945 = vadd.f32 %v943, 1.0
    %v946 = vrcp.pop %v944
    %v947 = vrcp.pop %v945
    %v948 = vpack.c.bf16 %v947, %v946
    %950 = vrot.lane.b32.xlu0 %v948, 64
    %v951 = vpop.permute.xlu0 %950
    %953 = vst.msk [vmem:[#allocation2 + $0x30] sm:$0xff] %vm810, %v951
    %v954 = vsub.f32 %v795, 8.0
    %v955 = vsub.f32 %v796, 8.0
    %v956 = vmul.f32 %v954, %v954
    %v957 = vmul.f32 %v955, %v955
    %v958 = vadd.f32 %v956, 1.0
    %v959 = vadd.f32 %v957, 1.0
    %v960 = vrcp.pop %v958
    %v961 = vrcp.pop %v959
    %v962 = vpack.c.bf16 %v961, %v960
    %963 = vst.msk [vmem:[#allocation2 + $0x38] sm:$0xff] %vm748, %v962
    %v964 = vsub.f32 %v795, 9.0
    %v965 = vsub.f32 %v796, 9.0
    %v966 = vmul.f32 %v964, %v964
    %v967 = vmul.f32 %v965, %v965
    %v968 = vadd.f32 %v966, 1.0
    %v969 = vadd.f32 %v967, 1.0
    %v970 = vrcp.pop %v968
    %v971 = vrcp.pop %v969
    %v972 = vpack.c.bf16 %v971, %v970
    %974 = vrot.lane.b32.xlu0 %v972, 64
    %v975 = vpop.permute.xlu0 %974
    %977 = vst.msk [vmem:[#allocation2 + $0x38] sm:$0xff] %vm810, %v975
    %v978 = vsub.f32 %v795, 10.0
    %v979 = vsub.f32 %v796, 10.0
    %v980 = vmul.f32 %v978, %v978
    %v981 = vmul.f32 %v979, %v979
    %v982 = vadd.f32 %v980, 1.0
    %v983 = vadd.f32 %v981, 1.0
    %v984 = vrcp.pop %v982
    %v985 = vrcp.pop %v983
    %v986 = vpack.c.bf16 %v985, %v984
    %987 = vst.msk [vmem:[#allocation2 + $0x40] sm:$0xff] %vm748, %v986
    %v988 = vld [vmem:[#allocation2] sm:$0xff]
    %v989 = vld [vmem:[#allocation2 + $0x8] sm:$0xff]
    %v990 = vld [vmem:[#allocation2 + $0x10] sm:$0xff]
    %v991 = vld [vmem:[#allocation2 + $0x18] sm:$0xff]
    %v992 = vld [vmem:[#allocation2 + $0x20] sm:$0xff]
    %v993 = vld [vmem:[#allocation2 + $0x28] sm:$0xff]
    %v994 = vld [vmem:[#allocation2 + $0x30] sm:$0xff]
    %v995 = vld [vmem:[#allocation2 + $0x38] sm:$0xff]
    %v996 = vld [vmem:[#allocation2 + $0x40] sm:$0xff]
    %v997 = vld [vmem:[#allocation3] sm:$0xf]
    %v998 = vld [vmem:[#allocation3 + $0x4] sm:$0xf]
    %v999 = vld [vmem:[#allocation3 + $0x8] sm:$0xf]
    %v1000 = vld [vmem:[#allocation3 + $0xc] sm:$0xf]
    %v1001 = vld [vmem:[#allocation3 + $0x10] sm:$0xf]
    %v1002 = vld [vmem:[#allocation3 + $0x14] sm:$0xf]
    %v1003 = vld [vmem:[#allocation3 + $0x18] sm:$0xf]
    %v1004 = vld [vmem:[#allocation3 + $0x1c] sm:$0xf]
    %v1005 = vld [vmem:[#allocation3 + $0x20] sm:$0xf]
    %v1006 = vld [vmem:[#allocation3 + $0x24] sm:$0xf]
    %v1007 = vld [vmem:[#allocation3 + $0x28] sm:$0xf]
    %v1008 = vld [vmem:[#allocation3 + $0x2c] sm:$0xf]
    %v1009 = vld [vmem:[#allocation3 + $0x30] sm:$0xf]
    %v1010 = vld [vmem:[#allocation3 + $0x34] sm:$0xf]
    %v1011 = vld [vmem:[#allocation3 + $0x38] sm:$0xf]
    %v1012 = vld [vmem:[#allocation3 + $0x3c] sm:$0xf]
    %v1013 = vld [vmem:[#allocation3 + $0x40] sm:$0xf]
    %v1014 = vld [vmem:[#allocation3 + $0x44] sm:$0xf]
    %v1015 = vld [vmem:[#allocation3 + $0x48] sm:$0xf]
    %v1016 = vld [vmem:[#allocation3 + $0x4c] sm:$0xf]
    %v1017 = vld [vmem:[#allocation3 + $0x50] sm:$0xf]
    %v1018 = vld [vmem:[#allocation3 + $0x54] sm:$0xf]
    %v1019 = vld [vmem:[#allocation3 + $0x58] sm:$0xf]
    %v1020 = vld [vmem:[#allocation3 + $0x5c] sm:$0xf]
    %v1021 = vld [vmem:[#allocation3 + $0x60] sm:$0xf]
    %v1022 = vld [vmem:[#allocation3 + $0x64] sm:$0xf]
    %v1023 = vld [vmem:[#allocation3 + $0x68] sm:$0xf]
    %v1024 = vld [vmem:[#allocation3 + $0x6c] sm:$0xf]
    %v1025 = vld [vmem:[#allocation3 + $0x70] sm:$0xf]
    %v1026 = vld [vmem:[#allocation3 + $0x74] sm:$0xf]
    %v1027 = vld [vmem:[#allocation3 + $0x78] sm:$0xf]
    %v1028 = vld [vmem:[#allocation3 + $0x7c] sm:$0xf]
    %v1029 = vld [vmem:[#allocation3 + $0x80] sm:$0xf]
    %v1030 = vld [vmem:[#allocation3 + $0x84] sm:$0xf]
    %v1031 = vld [vmem:[#allocation3 + $0x88] sm:$0xf]
    %v1032 = vld [vmem:[#allocation3 + $0x8c] sm:$0xf]
    %v1033 = vld [vmem:[#allocation3 + $0x90] sm:$0xf]
    %v1034 = vld [vmem:[#allocation3 + $0x94] sm:$0xf]
    %v1035 = vld [vmem:[#allocation3 + $0x98] sm:$0xf]
    %v1036 = vld [vmem:[#allocation3 + $0x9c] sm:$0xf]
    %v1037 = vld [vmem:[#allocation3 + $0xa0] sm:$0xf]
    %v1038 = vld [vmem:[#allocation3 + $0xa4] sm:$0xf]
    %v1039 = vld [vmem:[#allocation3 + $0xa8] sm:$0xf]
    %v1040 = vld [vmem:[#allocation3 + $0xac] sm:$0xf]
    %v1041 = vld [vmem:[#allocation3 + $0xb0] sm:$0xf]
    %v1042 = vld [vmem:[#allocation3 + $0xb4] sm:$0xf]
    %v1043 = vld [vmem:[#allocation3 + $0xb8] sm:$0xf]
    %v1044 = vld [vmem:[#allocation3 + $0xbc] sm:$0xf]
    %v1045 = vld [vmem:[#allocation3 + $0xc0] sm:$0xf]
    %v1046 = vld [vmem:[#allocation3 + $0xc4] sm:$0xf]
    %v1047 = vld [vmem:[#allocation3 + $0xc8] sm:$0xf]
    %v1048 = vld [vmem:[#allocation3 + $0xcc] sm:$0xf]
    %v1049 = vld [vmem:[#allocation3 + $0xd0] sm:$0xf]
    %v1050 = vld [vmem:[#allocation3 + $0xd4] sm:$0xf]
    %v1051 = vld [vmem:[#allocation3 + $0xd8] sm:$0xf]
    %v1052 = vld [vmem:[#allocation3 + $0xdc] sm:$0xf]
    %v1053 = vld [vmem:[#allocation3 + $0xe0] sm:$0xf]
    %v1054 = vld [vmem:[#allocation3 + $0xe4] sm:$0xf]
    %v1055 = vld [vmem:[#allocation3 + $0xe8] sm:$0xf]
    %v1056 = vld [vmem:[#allocation3 + $0xec] sm:$0xf]
    %v1057 = vld [vmem:[#allocation3 + $0xf0] sm:$0xf]
    %v1058 = vld [vmem:[#allocation3 + $0xf4] sm:$0xf]
    %v1059 = vld [vmem:[#allocation3 + $0xf8] sm:$0xf]
    %v1060 = vld [vmem:[#allocation3 + $0xfc] sm:$0xf]
    %v1061 = vld [vmem:[#allocation3 + $0x100] sm:$0xf]
    %v1062 = vld [vmem:[#allocation3 + $0x104] sm:$0xf]
    %v1063 = vld [vmem:[#allocation3 + $0x108] sm:$0xf]
    %v1064 = vld [vmem:[#allocation3 + $0x10c] sm:$0xf]
    %v1065 = vld [vmem:[#allocation3 + $0x110] sm:$0xf]
    %v1066 = vld [vmem:[#allocation3 + $0x114] sm:$0xf]
    %v1067 = vld [vmem:[#allocation3 + $0x118] sm:$0xf]
    %v1068 = vld [vmem:[#allocation3 + $0x11c] sm:$0xf]
    %v1069 = vld [vmem:[#allocation3 + $0x120] sm:$0xf]
    %v1070 = vld [vmem:[#allocation3 + $0x124] sm:$0xf]
    %v1071 = vld [vmem:[#allocation3 + $0x128] sm:$0xf]
    %v1072 = vld [vmem:[#allocation3 + $0x12c] sm:$0xf]
    %v1073 = vld [vmem:[#allocation3 + $0x130] sm:$0xf]
    %v1074 = vld [vmem:[#allocation3 + $0x134] sm:$0xf]
    %v1075 = vld [vmem:[#allocation3 + $0x138] sm:$0xf]
    %v1076 = vld [vmem:[#allocation3 + $0x13c] sm:$0xf]
    %v1077 = vld [vmem:[#allocation3 + $0x140] sm:$0xf]
    %v1078 = vld [vmem:[#allocation3 + $0x144] sm:$0xf]
    %v1079 = vld [vmem:[#allocation3 + $0x148] sm:$0xf]
    %v1080 = vld [vmem:[#allocation3 + $0x14c] sm:$0xf]
    %v1081 = vld [vmem:[#allocation3 + $0x150] sm:$0xf]
    %v1082 = vld [vmem:[#allocation3 + $0x154] sm:$0xf]
    %v1083 = vld [vmem:[#allocation3 + $0x158] sm:$0xf]
    %v1084 = vld [vmem:[#allocation3 + $0x15c] sm:$0xf]
    %v1085 = vld [vmem:[#allocation3 + $0x160] sm:$0xf]
    %v1086 = vld [vmem:[#allocation3 + $0x164] sm:$0xf]
    %v1087 = vld [vmem:[#allocation3 + $0x168] sm:$0xf]
    %v1088 = vld [vmem:[#allocation3 + $0x16c] sm:$0xf]
    %v1089 = vld [vmem:[#allocation3 + $0x170] sm:$0xf]
    %v1090 = vld [vmem:[#allocation3 + $0x174] sm:$0xf]
    %v1091 = vld [vmem:[#allocation3 + $0x178] sm:$0xf]
    %v1092 = vld [vmem:[#allocation3 + $0x17c] sm:$0xf]
    %v1093 = vld [vmem:[#allocation3 + $0x180] sm:$0xf]
    %v1094 = vld [vmem:[#allocation3 + $0x184] sm:$0xf]
    %v1095 = vld [vmem:[#allocation3 + $0x188] sm:$0xf]
    %v1096 = vld [vmem:[#allocation3 + $0x18c] sm:$0xf]
    %v1097 = vld [vmem:[#allocation3 + $0x190] sm:$0xf]
    %v1098 = vld [vmem:[#allocation3 + $0x194] sm:$0xf]
    %v1099 = vld [vmem:[#allocation3 + $0x198] sm:$0xf]
    %v1100 = vld [vmem:[#allocation3 + $0x19c] sm:$0xf]
    %v1101 = vld [vmem:[#allocation3 + $0x1a0] sm:$0xf]
    %v1102 = vld [vmem:[#allocation3 + $0x1a4] sm:$0xf]
    %v1103 = vld [vmem:[#allocation3 + $0x1a8] sm:$0xf]
    %v1104 = vld [vmem:[#allocation3 + $0x1ac] sm:$0xf]
    %v1105 = vld [vmem:[#allocation3 + $0x1b0] sm:$0xf]
    %v1106 = vld [vmem:[#allocation3 + $0x1b4] sm:$0xf]
    %v1107 = vld [vmem:[#allocation3 + $0x1b8] sm:$0xf]
    %v1108 = vld [vmem:[#allocation3 + $0x1bc] sm:$0xf]
    %v1109 = vld [vmem:[#allocation3 + $0x1c0] sm:$0xf]
    %v1110 = vld [vmem:[#allocation3 + $0x1c4] sm:$0xf]
    %v1111 = vld [vmem:[#allocation3 + $0x1c8] sm:$0xf]
    %v1112 = vld [vmem:[#allocation3 + $0x1cc] sm:$0xf]
    %v1113 = vld [vmem:[#allocation3 + $0x1d0] sm:$0xf]
    %v1114 = vld [vmem:[#allocation3 + $0x1d4] sm:$0xf]
    %v1115 = vld [vmem:[#allocation3 + $0x1d8] sm:$0xf]
    %v1116 = vld [vmem:[#allocation3 + $0x1dc] sm:$0xf]
    %v1117 = vld [vmem:[#allocation3 + $0x1e0] sm:$0xf]
    %v1118 = vld [vmem:[#allocation3 + $0x1e4] sm:$0xf]
    %v1119 = vld [vmem:[#allocation3 + $0x1e8] sm:$0xf]
    %v1120 = vld [vmem:[#allocation3 + $0x1ec] sm:$0xf]
    %v1121 = vld [vmem:[#allocation3 + $0x1f0] sm:$0xf]
    %v1122 = vld [vmem:[#allocation3 + $0x1f4] sm:$0xf]
    %v1123 = vld [vmem:[#allocation3 + $0x1f8] sm:$0xf]
    %v1124 = vld [vmem:[#allocation3 + $0x1fc] sm:$0xf]
    %v1125 = vld [vmem:[#allocation3 + $0x200] sm:$0xf]
    %v1126 = vld [vmem:[#allocation3 + $0x204] sm:$0xf]
    %v1127 = vld [vmem:[#allocation3 + $0x208] sm:$0xf]
    %v1128 = vld [vmem:[#allocation3 + $0x20c] sm:$0xf]
    %v1129 = vld [vmem:[#allocation3 + $0x210] sm:$0xf]
    %v1130 = vld [vmem:[#allocation3 + $0x214] sm:$0xf]
    %v1131 = vld [vmem:[#allocation3 + $0x218] sm:$0xf]
    %v1132 = vld [vmem:[#allocation3 + $0x21c] sm:$0xf]
    %v1133 = vld [vmem:[%s7] sm:$0x1]
    %v1135 = vlaneseq
    %v1136 = vshrl.u32 %v1135, 7
    %v1137 = vsub.s32 0, %v1136
    %v1138 = vrot.slane %v1133, %v1137
    %v1276 = vunpack.c.l.b16 %v997
    %v1277 = vunpack.c.l.b16 %v998
    %v1278 = vunpack.c.l.b16 %v999
    %v1279 = vunpack.c.l.b16 %v1000
    %v1280 = vunpack.c.l.b16 %v1001
    %v1281 = vunpack.c.l.b16 %v1002
    %v1282 = vunpack.c.l.b16 %v1003
    %v1283 = vunpack.c.l.b16 %v1004
    %v1284 = vunpack.c.l.b16 %v1005
    %v1285 = vunpack.c.l.b16 %v1006
    %v1286 = vunpack.c.l.b16 %v1007
    %v1287 = vunpack.c.l.b16 %v1008
    %v1288 = vunpack.c.l.b16 %v1009
    %v1289 = vunpack.c.l.b16 %v1010
    %v1290 = vunpack.c.l.b16 %v1011
    %v1291 = vunpack.c.l.b16 %v1012
    %v1292 = vunpack.c.l.b16 %v1013
    %v1293 = vunpack.c.l.b16 %v1014
    %v1294 = vunpack.c.l.b16 %v1015
    %v1295 = vunpack.c.l.b16 %v1016
    %v1296 = vunpack.c.l.b16 %v1017
    %v1297 = vunpack.c.l.b16 %v1018
    %v1298 = vunpack.c.l.b16 %v1019
    %v1299 = vunpack.c.l.b16 %v1020
    %v1300 = vunpack.c.l.b16 %v1021
    %v1301 = vunpack.c.l.b16 %v1022
    %v1302 = vunpack.c.l.b16 %v1023
    %v1303 = vunpack.c.l.b16 %v1024
    %v1304 = vunpack.c.l.b16 %v1025
    %v1305 = vunpack.c.l.b16 %v1026
    %v1306 = vunpack.c.l.b16 %v1027
    %v1307 = vunpack.c.l.b16 %v1028
    %v1308 = vunpack.c.l.b16 %v1029
    %v1309 = vunpack.c.l.b16 %v1030
    %v1310 = vunpack.c.l.b16 %v1031
    %v1311 = vunpack.c.l.b16 %v1032
    %v1312 = vunpack.c.l.b16 %v1033
    %v1313 = vunpack.c.l.b16 %v1034
    %v1314 = vunpack.c.l.b16 %v1035
    %v1315 = vunpack.c.l.b16 %v1036
    %v1316 = vunpack.c.l.b16 %v1037
    %v1317 = vunpack.c.l.b16 %v1038
    %v1318 = vunpack.c.l.b16 %v1039
    %v1319 = vunpack.c.l.b16 %v1040
    %v1320 = vunpack.c.l.b16 %v1041
    %v1321 = vunpack.c.l.b16 %v1042
    %v1322 = vunpack.c.l.b16 %v1043
    %v1323 = vunpack.c.l.b16 %v1044
    %v1324 = vunpack.c.l.b16 %v1045
    %v1325 = vunpack.c.l.b16 %v1046
    %v1326 = vunpack.c.l.b16 %v1047
    %v1327 = vunpack.c.l.b16 %v1048
    %v1328 = vunpack.c.l.b16 %v1049
    %v1329 = vunpack.c.l.b16 %v1050
    %v1330 = vunpack.c.l.b16 %v1051
    %v1331 = vunpack.c.l.b16 %v1052
    %v1332 = vunpack.c.l.b16 %v1053
    %v1333 = vunpack.c.l.b16 %v1054
    %v1334 = vunpack.c.l.b16 %v1055
    %v1335 = vunpack.c.l.b16 %v1056
    %v1336 = vunpack.c.l.b16 %v1057
    %v1337 = vunpack.c.l.b16 %v1058
    %v1338 = vunpack.c.l.b16 %v1059
    %v1339 = vunpack.c.l.b16 %v1060
    %v1340 = vunpack.c.l.b16 %v1061
    %v1341 = vunpack.c.l.b16 %v1062
    %v1342 = vunpack.c.l.b16 %v1063
    %v1343 = vunpack.c.l.b16 %v1064
    %v1344 = vunpack.c.l.b16 %v1065
    %v1345 = vunpack.c.l.b16 %v1066
    %v1346 = vunpack.c.l.b16 %v1067
    %v1347 = vunpack.c.l.b16 %v1068
    %v1348 = vunpack.c.l.b16 %v1069
    %v1349 = vunpack.c.l.b16 %v1070
    %v1350 = vunpack.c.l.b16 %v1071
    %v1351 = vunpack.c.l.b16 %v1072
    %v1352 = vunpack.c.l.b16 %v1073
    %v1353 = vunpack.c.l.b16 %v1074
    %v1354 = vunpack.c.l.b16 %v1075
    %v1355 = vunpack.c.l.b16 %v1076
    %v1356 = vunpack.c.l.b16 %v1077
    %v1357 = vunpack.c.l.b16 %v1078
    %v1358 = vunpack.c.l.b16 %v1079
    %v1359 = vunpack.c.l.b16 %v1080
    %v1360 = vunpack.c.l.b16 %v1081
    %v1361 = vunpack.c.l.b16 %v1082
    %v1362 = vunpack.c.l.b16 %v1083
    %v1363 = vunpack.c.l.b16 %v1084
    %v1364 = vunpack.c.l.b16 %v1085
    %v1365 = vunpack.c.l.b16 %v1086
    %v1366 = vunpack.c.l.b16 %v1087
    %v1367 = vunpack.c.l.b16 %v1088
    %v1368 = vunpack.c.l.b16 %v1089
    %v1369 = vunpack.c.l.b16 %v1090
    %v1370 = vunpack.c.l.b16 %v1091
    %v1371 = vunpack.c.l.b16 %v1092
    %v1372 = vunpack.c.l.b16 %v1093
    %v1373 = vunpack.c.l.b16 %v1094
    %v1374 = vunpack.c.l.b16 %v1095
    %v1375 = vunpack.c.l.b16 %v1096
    %v1376 = vunpack.c.l.b16 %v1097
    %v1377 = vunpack.c.l.b16 %v1098
    %v1378 = vunpack.c.l.b16 %v1099
    %v1379 = vunpack.c.l.b16 %v1100
    %v1380 = vunpack.c.l.b16 %v1101
    %v1381 = vunpack.c.l.b16 %v1102
    %v1382 = vunpack.c.l.b16 %v1103
    %v1383 = vunpack.c.l.b16 %v1104
    %v1384 = vunpack.c.l.b16 %v1105
    %v1385 = vunpack.c.l.b16 %v1106
    %v1386 = vunpack.c.l.b16 %v1107
    %v1387 = vunpack.c.l.b16 %v1108
    %v1388 = vunpack.c.l.b16 %v1109
    %v1389 = vunpack.c.l.b16 %v1110
    %v1390 = vunpack.c.l.b16 %v1111
    %v1391 = vunpack.c.l.b16 %v1112
    %v1392 = vunpack.c.l.b16 %v1113
    %v1393 = vunpack.c.l.b16 %v1114
    %v1394 = vunpack.c.l.b16 %v1115
    %v1395 = vunpack.c.l.b16 %v1116
    %v1396 = vunpack.c.l.b16 %v1117
    %v1397 = vunpack.c.l.b16 %v1118
    %v1398 = vunpack.c.l.b16 %v1119
    %v1399 = vunpack.c.l.b16 %v1120
    %v1400 = vunpack.c.l.b16 %v1121
    %v1401 = vunpack.c.l.b16 %v1122
    %v1402 = vunpack.c.l.b16 %v1123
    %v1403 = vunpack.c.l.b16 %v1124
    %v1404 = vunpack.c.l.b16 %v1125
    %v1405 = vunpack.c.l.b16 %v1126
    %v1406 = vunpack.c.l.b16 %v1127
    %v1407 = vunpack.c.l.b16 %v1128
    %v1408 = vunpack.c.l.b16 %v1129
    %v1409 = vunpack.c.l.b16 %v1130
    %v1410 = vunpack.c.l.b16 %v1131
    %v1411 = vunpack.c.l.b16 %v1132
    %v1412 = vpack.c.b16 %v1277, %v1276
    %v1413 = vpack.c.b16 %v1279, %v1278
    %v1414 = vpack.c.b16 %v1281, %v1280
    %v1415 = vpack.c.b16 %v1283, %v1282
    %v1416 = vpack.c.b16 %v1285, %v1284
    %v1417 = vpack.c.b16 %v1287, %v1286
    %v1418 = vpack.c.b16 %v1289, %v1288
    %v1419 = vpack.c.b16 %v1291, %v1290
    %v1420 = vpack.c.b16 %v1293, %v1292
    %v1421 = vpack.c.b16 %v1295, %v1294
    %v1422 = vpack.c.b16 %v1297, %v1296
    %v1423 = vpack.c.b16 %v1299, %v1298
    %v1424 = vpack.c.b16 %v1301, %v1300
    %v1425 = vpack.c.b16 %v1303, %v1302
    %v1426 = vpack.c.b16 %v1305, %v1304
    %v1427 = vpack.c.b16 %v1307, %v1306
    %v1428 = vpack.c.b16 %v1309, %v1308
    %v1429 = vpack.c.b16 %v1311, %v1310
    %v1430 = vpack.c.b16 %v1313, %v1312
    %v1431 = vpack.c.b16 %v1315, %v1314
    %v1432 = vpack.c.b16 %v1317, %v1316
    %v1433 = vpack.c.b16 %v1319, %v1318
    %v1434 = vpack.c.b16 %v1321, %v1320
    %v1435 = vpack.c.b16 %v1323, %v1322
    %v1436 = vpack.c.b16 %v1325, %v1324
    %v1437 = vpack.c.b16 %v1327, %v1326
    %v1438 = vpack.c.b16 %v1329, %v1328
    %v1439 = vpack.c.b16 %v1331, %v1330
    %v1440 = vpack.c.b16 %v1333, %v1332
    %v1441 = vpack.c.b16 %v1335, %v1334
    %v1442 = vpack.c.b16 %v1337, %v1336
    %v1443 = vpack.c.b16 %v1339, %v1338
    %v1444 = vpack.c.b16 %v1341, %v1340
    %v1445 = vpack.c.b16 %v1343, %v1342
    %v1446 = vpack.c.b16 %v1345, %v1344
    %v1447 = vpack.c.b16 %v1347, %v1346
    %v1448 = vpack.c.b16 %v1349, %v1348
    %v1449 = vpack.c.b16 %v1351, %v1350
    %v1450 = vpack.c.b16 %v1353, %v1352
    %v1451 = vpack.c.b16 %v1355, %v1354
    %v1452 = vpack.c.b16 %v1357, %v1356
    %v1453 = vpack.c.b16 %v1359, %v1358
    %v1454 = vpack.c.b16 %v1361, %v1360
    %v1455 = vpack.c.b16 %v1363, %v1362
    %v1456 = vpack.c.b16 %v1365, %v1364
    %v1457 = vpack.c.b16 %v1367, %v1366
    %v1458 = vpack.c.b16 %v1369, %v1368
    %v1459 = vpack.c.b16 %v1371, %v1370
    %v1460 = vpack.c.b16 %v1373, %v1372
    %v1461 = vpack.c.b16 %v1375, %v1374
    %v1462 = vpack.c.b16 %v1377, %v1376
    %v1463 = vpack.c.b16 %v1379, %v1378
    %v1464 = vpack.c.b16 %v1381, %v1380
    %v1465 = vpack.c.b16 %v1383, %v1382
    %v1466 = vpack.c.b16 %v1385, %v1384
    %v1467 = vpack.c.b16 %v1387, %v1386
    %v1468 = vpack.c.b16 %v1389, %v1388
    %v1469 = vpack.c.b16 %v1391, %v1390
    %v1470 = vpack.c.b16 %v1393, %v1392
    %v1471 = vpack.c.b16 %v1395, %v1394
    %v1472 = vpack.c.b16 %v1397, %v1396
    %v1473 = vpack.c.b16 %v1399, %v1398
    %v1474 = vpack.c.b16 %v1401, %v1400
    %v1475 = vpack.c.b16 %v1403, %v1402
    %v1476 = vpack.c.b16 %v1405, %v1404
    %v1477 = vpack.c.b16 %v1407, %v1406
    %v1478 = vpack.c.b16 %v1409, %v1408
    %v1479 = vpack.c.b16 %v1411, %v1410
    %v1549 = vsel %vm748, %v996, 0
    %1551 = vmatprep.subr.bf16.mxu0 0
    %1552 = vmatpush1.bf16.msra.mxu0 %v1412
    %1553 = vmatprep.subr.bf16.mxu0 0
    %1554 = vmatpush1.bf16.msra.mxu0 %v1413
    %1555 = vmatprep.subr.bf16.mxu0 0
    %1556 = vmatpush1.bf16.msra.mxu0 %v1414
    %1557 = vmatprep.subr.bf16.mxu0 0
    %1558 = vmatpush1.bf16.msra.mxu0 %v1415
    %1559 = vmatprep.subr.bf16.mxu0 0
    %1560 = vmatpush1.bf16.msra.mxu0 %v1416
    %1561 = vmatprep.subr.bf16.mxu0 0
    %1562 = vmatpush1.bf16.msra.mxu0 %v1417
    %1563 = vmatprep.subr.bf16.mxu0 0
    %1564 = vmatpush1.bf16.msra.mxu0 %v1418
    %1565 = vmatprep.subr.bf16.mxu0 0
    %1566 = vmatpush1.bf16.msra.mxu0 %v1419
    %1567 = vmatprep.subr.bf16.mxu0 0
    %1568 = vmatpush1.bf16.msra.mxu0 %v1420
    %1569 = vmatprep.subr.bf16.mxu0 0
    %1570 = vmatpush1.bf16.msra.mxu0 %v1421
    %1571 = vmatprep.subr.bf16.mxu0 0
    %1572 = vmatpush1.bf16.msra.mxu0 %v1422
    %1573 = vmatprep.subr.bf16.mxu0 0
    %1574 = vmatpush1.bf16.msra.mxu0 %v1423
    %1575 = vmatprep.subr.bf16.mxu0 0
    %1576 = vmatpush1.bf16.msra.mxu0 %v1424
    %1577 = vmatprep.subr.bf16.mxu0 0
    %1578 = vmatpush1.bf16.msra.mxu0 %v1425
    %1579 = vmatprep.subr.bf16.mxu0 0
    %1580 = vmatpush1.bf16.msra.mxu0 %v1426
    %1581 = vmatprep.subr.bf16.mxu0 0
    %1582 = vmatpush1.bf16.msra.mxu0 %v1427
    %1583 = vmatprep.mubr.bf16.mxu0 %v989
    %1584 = vmatmul.mubr.bf16.gmra.mrb[0].mxu0 %v988
    %v1585 = vpop.f32.mrb[0].mxu0
    %v1586 = vadd.f32 %v1138, %v1585
    %v1587 = vpop.f32.mrb[0].mxu0
    %v1588 = vpop.f32.mrb[0].mxu0
    %v1589 = vadd.f32 %v1138, %v1588
    %v1590 = vpop.f32.mrb[0].mxu0
    %1591 = vdwg.mxu0
    %1592 = vmatprep.subr.bf16.mxu0 0
    %1593 = vmatpush1.bf16.msra.mxu0 %v1428
    %1594 = vmatprep.subr.bf16.mxu0 0
    %1595 = vmatpush1.bf16.msra.mxu0 %v1429
    %1596 = vmatprep.subr.bf16.mxu0 0
    %1597 = vmatpush1.bf16.msra.mxu0 %v1430
    %1598 = vmatprep.subr.bf16.mxu0 0
    %1599 = vmatpush1.bf16.msra.mxu0 %v1431
    %1600 = vmatprep.subr.bf16.mxu0 0
    %1601 = vmatpush1.bf16.msra.mxu0 %v1432
    %1602 = vmatprep.subr.bf16.mxu0 0
    %1603 = vmatpush1.bf16.msra.mxu0 %v1433
    %1604 = vmatprep.subr.bf16.mxu0 0
    %1605 = vmatpush1.bf16.msra.mxu0 %v1434
    %1606 = vmatprep.subr.bf16.mxu0 0
    %1607 = vmatpush1.bf16.msra.mxu0 %v1435
    %1608 = vmatprep.subr.bf16.mxu0 0
    %1609 = vmatpush1.bf16.msra.mxu0 %v1436
    %1610 = vmatprep.subr.bf16.mxu0 0
    %1611 = vmatpush1.bf16.msra.mxu0 %v1437
    %1612 = vmatprep.subr.bf16.mxu0 0
    %1613 = vmatpush1.bf16.msra.mxu0 %v1438
    %1614 = vmatprep.subr.bf16.mxu0 0
    %1615 = vmatpush1.bf16.msra.mxu0 %v1439
    %1616 = vmatprep.subr.bf16.mxu0 0
    %1617 = vmatpush1.bf16.msra.mxu0 %v1440
    %1618 = vmatprep.subr.bf16.mxu0 0
    %1619 = vmatpush1.bf16.msra.mxu0 %v1441
    %1620 = vmatprep.subr.bf16.mxu0 0
    %1621 = vmatpush1.bf16.msra.mxu0 %v1442
    %1622 = vmatprep.subr.bf16.mxu0 0
    %1623 = vmatpush1.bf16.msra.mxu0 %v1443
    %1624 = vmatprep.mubr.bf16.mxu0 %v991
    %1625 = vmatmul.mubr.bf16.gmra.mrb[0].mxu0 %v990
    %v1626 = vpop.f32.mrb[0].mxu0
    %v1627 = vadd.f32 %v1586, %v1626
    %v1628 = vpop.f32.mrb[0].mxu0
    %v1629 = vpop.f32.mrb[0].mxu0
    %v1630 = vadd.f32 %v1589, %v1629
    %v1631 = vpop.f32.mrb[0].mxu0
    %1632 = vdwg.mxu0
    %1633 = vmatprep.subr.bf16.mxu0 0
    %1634 = vmatpush1.bf16.msra.mxu0 %v1444
    %1635 = vmatprep.subr.bf16.mxu0 0
    %1636 = vmatpush1.bf16.msra.mxu0 %v1445
    %1637 = vmatprep.subr.bf16.mxu0 0
    %1638 = vmatpush1.bf16.msra.mxu0 %v1446
    %1639 = vmatprep.subr.bf16.mxu0 0
    %1640 = vmatpush1.bf16.msra.mxu0 %v1447
    %1641 = vmatprep.subr.bf16.mxu0 0
    %1642 = vmatpush1.bf16.msra.mxu0 %v1448
    %1643 = vmatprep.subr.bf16.mxu0 0
    %1644 = vmatpush1.bf16.msra.mxu0 %v1449
    %1645 = vmatprep.subr.bf16.mxu0 0
    %1646 = vmatpush1.bf16.msra.mxu0 %v1450
    %1647 = vmatprep.subr.bf16.mxu0 0
    %1648 = vmatpush1.bf16.msra.mxu0 %v1451
    %1649 = vmatprep.subr.bf16.mxu0 0
    %1650 = vmatpush1.bf16.msra.mxu0 %v1452
    %1651 = vmatprep.subr.bf16.mxu0 0
    %1652 = vmatpush1.bf16.msra.mxu0 %v1453
    %1653 = vmatprep.subr.bf16.mxu0 0
    %1654 = vmatpush1.bf16.msra.mxu0 %v1454
    %1655 = vmatprep.subr.bf16.mxu0 0
    %1656 = vmatpush1.bf16.msra.mxu0 %v1455
    %1657 = vmatprep.subr.bf16.mxu0 0
    %1658 = vmatpush1.bf16.msra.mxu0 %v1456
    %1659 = vmatprep.subr.bf16.mxu0 0
    %1660 = vmatpush1.bf16.msra.mxu0 %v1457
    %1661 = vmatprep.subr.bf16.mxu0 0
    %1662 = vmatpush1.bf16.msra.mxu0 %v1458
    %1663 = vmatprep.subr.bf16.mxu0 0
    %1664 = vmatpush1.bf16.msra.mxu0 %v1459
    %1665 = vmatprep.mubr.bf16.mxu0 %v993
    %1666 = vmatmul.mubr.bf16.gmra.mrb[0].mxu0 %v992
    %v1667 = vpop.f32.mrb[0].mxu0
    %v1668 = vadd.f32 %v1627, %v1667
    %v1669 = vpop.f32.mrb[0].mxu0
    %v1670 = vpop.f32.mrb[0].mxu0
    %v1671 = vadd.f32 %v1630, %v1670
    %v1672 = vpop.f32.mrb[0].mxu0
    %1673 = vdwg.mxu0
    %1674 = vmatprep.subr.bf16.mxu0 0
    %1675 = vmatpush1.bf16.msra.mxu0 %v1460
    %1676 = vmatprep.subr.bf16.mxu0 0
    %1677 = vmatpush1.bf16.msra.mxu0 %v1461
    %1678 = vmatprep.subr.bf16.mxu0 0
    %1679 = vmatpush1.bf16.msra.mxu0 %v1462
    %1680 = vmatprep.subr.bf16.mxu0 0
    %1681 = vmatpush1.bf16.msra.mxu0 %v1463
    %1682 = vmatprep.subr.bf16.mxu0 0
    %1683 = vmatpush1.bf16.msra.mxu0 %v1464
    %1684 = vmatprep.subr.bf16.mxu0 0
    %1685 = vmatpush1.bf16.msra.mxu0 %v1465
    %1686 = vmatprep.subr.bf16.mxu0 0
    %1687 = vmatpush1.bf16.msra.mxu0 %v1466
    %1688 = vmatprep.subr.bf16.mxu0 0
    %1689 = vmatpush1.bf16.msra.mxu0 %v1467
    %1690 = vmatprep.subr.bf16.mxu0 0
    %1691 = vmatpush1.bf16.msra.mxu0 %v1468
    %1692 = vmatprep.subr.bf16.mxu0 0
    %1693 = vmatpush1.bf16.msra.mxu0 %v1469
    %1694 = vmatprep.subr.bf16.mxu0 0
    %1695 = vmatpush1.bf16.msra.mxu0 %v1470
    %1696 = vmatprep.subr.bf16.mxu0 0
    %1697 = vmatpush1.bf16.msra.mxu0 %v1471
    %1698 = vmatprep.subr.bf16.mxu0 0
    %1699 = vmatpush1.bf16.msra.mxu0 %v1472
    %1700 = vmatprep.subr.bf16.mxu0 0
    %1701 = vmatpush1.bf16.msra.mxu0 %v1473
    %1702 = vmatprep.subr.bf16.mxu0 0
    %1703 = vmatpush1.bf16.msra.mxu0 %v1474
    %1704 = vmatprep.subr.bf16.mxu0 0
    %1705 = vmatpush1.bf16.msra.mxu0 %v1475
    %1706 = vmatprep.mubr.bf16.mxu0 %v995
    %1707 = vmatmul.mubr.bf16.gmra.mrb[0].mxu0 %v994
    %v1708 = vpop.f32.mrb[0].mxu0
    %v1709 = vadd.f32 %v1668, %v1708
    %v1710 = vpop.f32.mrb[0].mxu0
    %v1711 = vpop.f32.mrb[0].mxu0
    %v1712 = vadd.f32 %v1671, %v1711
    %v1713 = vpop.f32.mrb[0].mxu0
    %1714 = vdwg.mxu0
    %1715 = vmatprep.subr.bf16.mxu0 0
    %1716 = vmatpush1.bf16.msra.mxu0 %v1476
    %1717 = vmatprep.subr.bf16.mxu0 0
    %1718 = vmatpush1.bf16.msra.mxu0 %v1477
    %1719 = vmatprep.subr.bf16.mxu0 0
    %1720 = vmatpush1.bf16.msra.mxu0 %v1478
    %1721 = vmatprep.subr.bf16.mxu0 0
    %1722 = vmatpush1.bf16.msra.mxu0 %v1479
    %1723 = vmatprep.subr.bf16.mxu0 0
    %1724 = vmatpush1.bf16.msra.mxu0 0
    %1725 = vmatprep.subr.bf16.mxu0 0
    %1726 = vmatpush1.bf16.msra.mxu0 0
    %1727 = vmatprep.subr.bf16.mxu0 0
    %1728 = vmatpush1.bf16.msra.mxu0 0
    %1729 = vmatprep.subr.bf16.mxu0 0
    %1730 = vmatpush1.bf16.msra.mxu0 0
    %1731 = vmatprep.subr.bf16.mxu0 0
    %1732 = vmatpush1.bf16.msra.mxu0 0
    %1733 = vmatprep.subr.bf16.mxu0 0
    %1734 = vmatpush1.bf16.msra.mxu0 0
    %1735 = vmatprep.subr.bf16.mxu0 0
    %1736 = vmatpush1.bf16.msra.mxu0 0
    %1737 = vmatprep.subr.bf16.mxu0 0
    %1738 = vmatpush1.bf16.msra.mxu0 0
    %1739 = vmatprep.subr.bf16.mxu0 0
    %1740 = vmatpush1.bf16.msra.mxu0 0
    %1741 = vmatprep.subr.bf16.mxu0 0
    %1742 = vmatpush1.bf16.msra.mxu0 0
    %1743 = vmatprep.subr.bf16.mxu0 0
    %1744 = vmatpush1.bf16.msra.mxu0 0
    %1745 = vmatprep.subr.bf16.mxu0 0
    %1746 = vmatpush1.bf16.msra.mxu0 0
    %1747 = vmatprep.mubr.bf16.mxu0 0
    %1748 = vmatmul.mubr.bf16.gmra.mrb[0].mxu0 %v1549
    %v1749 = vpop.f32.mrb[0].mxu0
    %v1750 = vadd.f32 %v1709, %v1749
    %v1751 = vpop.f32.mrb[0].mxu0
    %v1752 = vpop.f32.mrb[0].mxu0
    %v1753 = vadd.f32 %v1712, %v1752
    %v1754 = vpop.f32.mrb[0].mxu0
    %1755 = vdwg.mxu0
    %1756 = vst [vmem:[#allocation6] sm:$0xff] %v1750
    %1757 = vst [vmem:[#allocation6 + $0x8] sm:$0xff] %v1753
    // Predicated region
    $region42: #{tpu_custom_call.1} parent=1 // pred_check
      _
    $region43: #{tpu_custom_call.1} parent=1 // pred_check_branch
      %1759 = sbr.rel (0) target = $region45
    $region44: #{tpu_custom_call.1} parent=1 // pred_region
      %s1761 = ssub.s32 256, 256
      %1762 = vsyncadd [#allocation5], %s1761
      %s1763 = sshll.u32 [#allocation6], 4
      %s1764 = int_to_ptr.vmem [resolvable:$true] %s1763
      %1769 = dma.vmem_to_hbm [thread:$0]  %s1764, 256, %s9, [#allocation5], 128, 128, 8
    $region45: #{tpu_custom_call.1} parent=1 // pred_fallthru
      _
    // Predicated region
    $region46: #{tpu_custom_call.1} parent=1 // pred_check
      _
    $region47: #{tpu_custom_call.1} parent=1 // pred_check_branch
      %1771 = sbr.rel (0) target = $region49
    $region48: #{tpu_custom_call.1} parent=1 // pred_region
      %1772 = dma.done [#allocation5], 256
    $region49: #{tpu_custom_call.1} parent=1 // pred_fallthru
      _
    %1773 = vsyncpa [#allocation4], 1
    %1774 = vsyncpa [#allocation5], 1

</llo_original>
